<compile_context>
chip_gen: v7x
topology: tpu7x:2x2x1
jax: 0.10.0
libtpu: 0.0.40
codegen_flags: <defaults>
</compile_context>

<pallas_src>
import functools

import jax
import jax.numpy as jnp
from jax import lax
from jax.experimental import pallas as pl
from jax.experimental.pallas import tpu as pltpu


# ----------------------------------------------------------------------------
# Fused kernel: all LSTM layers (layer-outer / time-inner) + output Linear.
# ----------------------------------------------------------------------------
def _rnn_fused_kernel(x_ref, *refs, num_layers, hidden_dims, seq_len, batch_p):
    """refs = (w_ih_t_0, w_hh_t_0, bias_0, ..., w_ih_t_{L-1}, w_hh_t_{L-1},
               bias_{L-1}, w_out, b_out, out_ref, seq_buf, gates_buf)

    x_ref     : (S*Bp, F)      flattened, batch pre-padded to Bp (multiple of 8)
    w_ih_t_l  : (F_l, 4H)      gate blocks in [i, f, o, g] order
    w_hh_t_l  : (H, 4H)
    bias_l    : (1, 4H)        b_ih + b_hh, same gate order
    w_out     : (H, O), b_out : (1, O)
    out_ref   : (S*Bp, O)
    seq_buf   : VMEM (S*Bp, H)   current layer's output-h sequence
    gates_buf : VMEM (S*Bp, 4H)  pre-computed input-side gates for current layer
    """
    H, S, Bp = hidden_dims, seq_len, batch_p
    n_w = 3 * num_layers + 2
    w_refs = refs[:n_w]
    out_ref = refs[n_w]
    seq_buf = refs[n_w + 1]
    gates_buf = refs[n_w + 2]

    for layer in range(num_layers):
        w_ih_ref = w_refs[3 * layer]
        w_hh_ref = w_refs[3 * layer + 1]
        b_ref = w_refs[3 * layer + 2]

        # ---- input-side GEMM + bias, hoisted out of the recurrence ----------
        # One (S*Bp, F_l) x (F_l, 4H) MXU pass; bias broadcast happens once per
        # layer instead of once per step.
        inp = x_ref[...] if layer == 0 else seq_buf[...]
        gates_buf[...] = (
            jnp.dot(inp, w_ih_ref[...], preferred_element_type=jnp.float32)
            + b_ref[...]
        )

        # Hoist only the small recurrent weight into vregs for the time loop.
        w_hh = w_hh_ref[...]                                     # (H, 4H)

        h0 = jnp.zeros((Bp, H), jnp.float32)
        c0 = jnp.zeros((Bp, H), jnp.float32)

        def step(t, carry, w_hh=w_hh):
            h_prev, c_prev = carry
            off = pl.multiple_of(t * Bp, 8)                      # 8-aligned slice
            pre = gates_buf[pl.ds(off, Bp), :]                   # (Bp, 4H)
            # Only per-step work on the serial chain: one (Bp,H)x(H,4H) matmul.
            gates = pre + jnp.dot(h_prev, w_hh,
                                  preferred_element_type=jnp.float32)
            # Gate order [i, f, o, g]: contiguous sigmoid slab + trailing tanh.
            sig = jax.nn.sigmoid(gates[:, :3 * H])
            g_g = jnp.tanh(gates[:, 3 * H:])
            i_g = sig[:, 0 * H:1 * H]
            f_g = sig[:, 1 * H:2 * H]
            o_g = sig[:, 2 * H:3 * H]
            c_new = f_g * c_prev + i_g * g_g
            h_new = o_g * jnp.tanh(c_new)
            seq_buf[pl.ds(off, Bp), :] = h_new                   # feeds next layer
            return h_new, c_new

        # Partial unroll keeps LLO scheduling visibility without exploding the
        # instruction count / vreg live ranges at large S.
        lax.fori_loop(0, S, step, (h0, c0), unroll=min(S, 8))

    # ---- single batched output projection + single store ---------------------
    w_out = w_refs[n_w - 2][...]                                 # (H, O)
    b_out = w_refs[n_w - 1][...]                                 # (1, O)
    out_ref[...] = (
        jnp.dot(seq_buf[...], w_out, preferred_element_type=jnp.float32) + b_out
    ).astype(out_ref.dtype)


def _reorder_ifgo_to_ifog(w, H):
    """Permute PyTorch gate blocks [i, f, g, o] -> [i, f, o, g] along axis 0."""
    return jnp.concatenate([w[:H], w[H:2 * H], w[3 * H:], w[2 * H:3 * H]], axis=0)


# ----------------------------------------------------------------------------
# Wrapper: pad batch, flatten, prep kernel-layout weights, one pallas_call.
# ----------------------------------------------------------------------------
def rnn_forward(params, x):
    """x: (S, B, F) float32 -> (S, B, out_dims)   [mirrors RNN.forward]."""
    S, B, F = x.shape
    L = len(params["lstm"])
    H = params["lstm"][0]["w_hh"].shape[1]
    O = params["out"]["w"].shape[0]

    # Pad batch to a multiple of 8 sublanes so per-step slices are 8-aligned.
    Bp = ((B + 7) // 8) * 8
    if Bp != B:
        x = jnp.pad(x, ((0, 0), (0, Bp - B), (0, 0)))
    x_flat = x.reshape(S * Bp, F).astype(jnp.float32)

    args = [x_flat]
    for lp in params["lstm"]:
        w_ih_t = _reorder_ifgo_to_ifog(lp["w_ih"], H).T          # (F_l, 4H)
        w_hh_t = _reorder_ifgo_to_ifog(lp["w_hh"], H).T          # (H, 4H)
        bias = _reorder_ifgo_to_ifog(lp["b_ih"] + lp["b_hh"], H).reshape(1, 4 * H)
        args += [w_ih_t, w_hh_t, bias]
    args += [params["out"]["w"].T.astype(jnp.float32),           # (H, O)
             params["out"]["b"].reshape(1, O).astype(jnp.float32)]

    kernel = functools.partial(_rnn_fused_kernel, num_layers=L, hidden_dims=H,
                               seq_len=S, batch_p=Bp)
    out_flat = pl.pallas_call(
        kernel,
        out_shape=jax.ShapeDtypeStruct((S * Bp, O), jnp.float32),
        in_specs=[pl.BlockSpec(memory_space=pltpu.MemorySpace.VMEM)
                  for _ in args],
        out_specs=pl.BlockSpec(memory_space=pltpu.MemorySpace.VMEM),
        scratch_shapes=[pltpu.VMEM((S * Bp, H), jnp.float32),       # seq_buf
                        pltpu.VMEM((S * Bp, 4 * H), jnp.float32)],  # gates_buf
    )(*args)

    return out_flat.reshape(S, Bp, O)[:, :B, :]


# ----------------------------------------------------------------------------
# Parameter construction (PyTorch nn.LSTM / nn.Linear layout, deterministic).
# ----------------------------------------------------------------------------
def init_params(key, feature_nums, hidden_dims, num_layers, out_dims):
    params = {"lstm": [], "out": None}
    bound = 1.0 / jnp.sqrt(hidden_dims)
    for layer in range(num_layers):
        in_sz = feature_nums if layer == 0 else hidden_dims
        key, k1, k2, k3, k4 = jax.random.split(key, 5)
        params["lstm"].append({
            "w_ih": jax.random.uniform(k1, (4 * hidden_dims, in_sz),
                                       minval=-bound, maxval=bound,
                                       dtype=jnp.float32),
            "w_hh": jax.random.uniform(k2, (4 * hidden_dims, hidden_dims),
                                       minval=-bound, maxval=bound,
                                       dtype=jnp.float32),
            "b_ih": jax.random.uniform(k3, (4 * hidden_dims,),
                                       minval=-bound, maxval=bound,
                                       dtype=jnp.float32),
            "b_hh": jax.random.uniform(k4, (4 * hidden_dims,),
                                       minval=-bound, maxval=bound,
                                       dtype=jnp.float32),
        })
    key, k1, k2 = jax.random.split(key, 3)
    params["out"] = {
        "w": jax.random.uniform(k1, (out_dims, hidden_dims),
                                minval=-bound, maxval=bound, dtype=jnp.float32),
        "b": jax.random.uniform(k2, (out_dims,),
                                minval=-bound, maxval=bound, dtype=jnp.float32),
    }
    return params


# ----------------------------------------------------------------------------
# Pure-JAX reference (standard PyTorch LSTM gate order [i, f, g, o]).
# ----------------------------------------------------------------------------
def rnn_ref(params, x):
    H = params["lstm"][0]["w_hh"].shape[1]
    h_seq = x.astype(jnp.float32)
    for lp in params["lstm"]:
        B = h_seq.shape[1]
        w_ih_t = lp["w_ih"].T
        w_hh_t = lp["w_hh"].T
        b = lp["b_ih"] + lp["b_hh"]

        def step(carry, x_t, w_ih_t=w_ih_t, w_hh_t=w_hh_t, b=b):
            h, c = carry
            gates = x_t @ w_ih_t + h @ w_hh_t + b
            i = jax.nn.sigmoid(gates[:, 0 * H:1 * H])
            f = jax.nn.sigmoid(gates[:, 1 * H:2 * H])
            g = jnp.tanh(gates[:, 2 * H:3 * H])
            o = jax.nn.sigmoid(gates[:, 3 * H:4 * H])
            c = f * c + i * g
            h = o * jnp.tanh(c)
            return (h, c), h

        init = (jnp.zeros((B, H), jnp.float32), jnp.zeros((B, H), jnp.float32))
        _, h_seq = lax.scan(step, init, h_seq)
    S, B, Hh = h_seq.shape
    out = h_seq.reshape(S * B, Hh) @ params["out"]["w"].T + params["out"]["b"]
    return out.reshape(S, B, -1)


if __name__ == "__main__":
    # NOTE: the reference module passes `bi_lstm` as nn.LSTM's 3rd positional arg,
    # which is num_layers (NOT bidirectional) -> stacked unidirectional LSTM.
    feature_nums = 16
    hidden_dims = 32
    bi_lstm = 2          # num_layers
    out_dims = 1
    seq, batch = 8, 4

    key = jax.random.PRNGKey(0)
    key, pkey, xkey = jax.random.split(key, 3)
    params = init_params(pkey, feature_nums, hidden_dims, bi_lstm, out_dims)
    x = jax.random.normal(xkey, (seq, batch, feature_nums), dtype=jnp.float32)

    out = rnn_forward(params, x)
    jax.block_until_ready(out)

    ref = rnn_ref(params, x)
    assert out.shape == (seq, batch, out_dims), out.shape
    assert jnp.allclose(out, ref, atol=1e-4, rtol=1e-3), "mismatch vs reference"
    print("KERNEL_OK")
</pallas_src>

<mosaic_0001>
module attributes {stable_mosaic.version = 11 : i64} {
  func.func @_rnn_fused_kernel(%arg0: memref<64x16xf32, #tpu.memory_space<vmem>>, %arg1: memref<16x128xf32, #tpu.memory_space<vmem>>, %arg2: memref<32x128xf32, #tpu.memory_space<vmem>>, %arg3: memref<1x128xf32, #tpu.memory_space<vmem>>, %arg4: memref<32x128xf32, #tpu.memory_space<vmem>>, %arg5: memref<32x128xf32, #tpu.memory_space<vmem>>, %arg6: memref<1x128xf32, #tpu.memory_space<vmem>>, %arg7: memref<32x1xf32, #tpu.memory_space<vmem>>, %arg8: memref<1x1xf32, #tpu.memory_space<vmem>>, %arg9: memref<64x1xf32, #tpu.memory_space<vmem>>, %arg10: memref<64x32xf32, #tpu.memory_space<vmem>>, %arg11: memref<64x128xf32, #tpu.memory_space<vmem>>) attributes {dimension_semantics = [], scalar_prefetch = 0 : i64, scratch_operands = 2 : i64, tpu.core_type = #tpu.core_type<tc>} {
    %c0 = arith.constant 0 : index
    %c0_0 = arith.constant 0 : index
    %0 = vector.load %arg0[%c0, %c0_0] : memref<64x16xf32, #tpu.memory_space<vmem>>, vector<64x16xf32>
    %c0_1 = arith.constant 0 : index
    %c0_2 = arith.constant 0 : index
    %1 = vector.load %arg1[%c0_1, %c0_2] : memref<16x128xf32, #tpu.memory_space<vmem>>, vector<16x128xf32>
    %cst = arith.constant dense<0.000000e+00> : vector<64x128xf32>
    %2 = tpu.matmul %0, %1, %cst {dimension_numbers = #tpu.dot_dimension_numbers<[1], [0], [0], [1], [0, 0, 1, 1], [], []>} : vector<64x16xf32>, vector<16x128xf32>, vector<64x128xf32> -> vector<64x128xf32>
    %c0_3 = arith.constant 0 : index
    %c0_4 = arith.constant 0 : index
    %3 = vector.load %arg3[%c0_3, %c0_4] : memref<1x128xf32, #tpu.memory_space<vmem>>, vector<1x128xf32>
    %4 = vector.broadcast %3 : vector<1x128xf32> to vector<64x128xf32>
    %5 = arith.addf %2, %4 : vector<64x128xf32>
    %c0_5 = arith.constant 0 : index
    %c0_6 = arith.constant 0 : index
    %6 = vector.load %arg11[%c0_5, %c0_6] : memref<64x128xf32, #tpu.memory_space<vmem>>, vector<64x128xf32>
    tpu.vector_store %arg11[%c0_5, %c0_6], %5 {strides = array<i32>} : memref<64x128xf32, #tpu.memory_space<vmem>>, vector<64x128xf32>,
    %c0_7 = arith.constant 0 : index
    %c0_8 = arith.constant 0 : index
    %7 = vector.load %arg2[%c0_7, %c0_8] : memref<32x128xf32, #tpu.memory_space<vmem>>, vector<32x128xf32>
    %cst_9 = arith.constant 0.000000e+00 : f32
    %8 = vector.broadcast %cst_9 : f32 to vector<8x32xf32>
    %cst_10 = arith.constant 0.000000e+00 : f32
    %9 = vector.broadcast %cst_10 : f32 to vector<8x32xf32>
    %c0_i32 = arith.constant 0 : i32
    %c8_i32 = arith.constant 8 : i32
    %10 = arith.muli %c0_i32, %c8_i32 : i32
    %11 = tpu.assume_multiple %10, 8 : i32
    %12 = arith.index_cast %11 : i32 to index
    %c0_11 = arith.constant 0 : index
    %13 = vector.load %arg11[%12, %c0_11] : memref<64x128xf32, #tpu.memory_space<vmem>>, vector<8x128xf32>
    %cst_12 = arith.constant dense<0.000000e+00> : vector<8x128xf32>
    %14 = tpu.matmul %8, %7, %cst_12 {dimension_numbers = #tpu.dot_dimension_numbers<[1], [0], [0], [1], [0, 0, 1, 1], [], []>} : vector<8x32xf32>, vector<32x128xf32>, vector<8x128xf32> -> vector<8x128xf32>
    %15 = arith.addf %13, %14 : vector<8x128xf32>
    %16 = vector.extract_strided_slice %15 {offsets = [0, 0], sizes = [8, 96], strides = [1, 1]} : vector<8x128xf32> to vector<8x96xf32>
    %17 = arith.negf %16 : vector<8x96xf32>
    %18 = math.exp %17 : vector<8x96xf32>
    %cst_13 = arith.constant 1.000000e+00 : f32
    %19 = vector.broadcast %cst_13 : f32 to vector<8x96xf32>
    %20 = arith.addf %19, %18 : vector<8x96xf32>
    %21 = arith.divf %19, %20 : vector<8x96xf32>
    %22 = vector.extract_strided_slice %15 {offsets = [0, 96], sizes = [8, 32], strides = [1, 1]} : vector<8x128xf32> to vector<8x32xf32>
    %23 = math.tanh %22 : vector<8x32xf32>
    %24 = vector.extract_strided_slice %21 {offsets = [0, 0], sizes = [8, 32], strides = [1, 1]} : vector<8x96xf32> to vector<8x32xf32>
    %25 = vector.extract_strided_slice %21 {offsets = [0, 32], sizes = [8, 32], strides = [1, 1]} : vector<8x96xf32> to vector<8x32xf32>
    %26 = vector.extract_strided_slice %21 {offsets = [0, 64], sizes = [8, 32], strides = [1, 1]} : vector<8x96xf32> to vector<8x32xf32>
    %27 = arith.mulf %25, %9 : vector<8x32xf32>
    %28 = arith.mulf %24, %23 : vector<8x32xf32>
    %29 = arith.addf %27, %28 : vector<8x32xf32>
    %30 = math.tanh %29 : vector<8x32xf32>
    %31 = arith.mulf %26, %30 : vector<8x32xf32>
    %32 = arith.index_cast %11 : i32 to index
    %c0_14 = arith.constant 0 : index
    %33 = vector.load %arg10[%32, %c0_14] : memref<64x32xf32, #tpu.memory_space<vmem>>, vector<8x32xf32>
    tpu.vector_store %arg10[%32, %c0_14], %31 {strides = array<i32>} : memref<64x32xf32, #tpu.memory_space<vmem>>, vector<8x32xf32>,
    %c1_i32 = arith.constant 1 : i32
    %c8_i32_15 = arith.constant 8 : i32
    %34 = arith.muli %c1_i32, %c8_i32_15 : i32
    %35 = tpu.assume_multiple %34, 8 : i32
    %36 = arith.index_cast %35 : i32 to index
    %c0_16 = arith.constant 0 : index
    %37 = vector.load %arg11[%36, %c0_16] : memref<64x128xf32, #tpu.memory_space<vmem>>, vector<8x128xf32>
    %cst_17 = arith.constant dense<0.000000e+00> : vector<8x128xf32>
    %38 = tpu.matmul %31, %7, %cst_17 {dimension_numbers = #tpu.dot_dimension_numbers<[1], [0], [0], [1], [0, 0, 1, 1], [], []>} : vector<8x32xf32>, vector<32x128xf32>, vector<8x128xf32> -> vector<8x128xf32>
    %39 = arith.addf %37, %38 : vector<8x128xf32>
    %40 = vector.extract_strided_slice %39 {offsets = [0, 0], sizes = [8, 96], strides = [1, 1]} : vector<8x128xf32> to vector<8x96xf32>
    %41 = arith.negf %40 : vector<8x96xf32>
    %42 = math.exp %41 : vector<8x96xf32>
    %cst_18 = arith.constant 1.000000e+00 : f32
    %43 = vector.broadcast %cst_18 : f32 to vector<8x96xf32>
    %44 = arith.addf %43, %42 : vector<8x96xf32>
    %45 = arith.divf %43, %44 : vector<8x96xf32>
    %46 = vector.extract_strided_slice %39 {offsets = [0, 96], sizes = [8, 32], strides = [1, 1]} : vector<8x128xf32> to vector<8x32xf32>
    %47 = math.tanh %46 : vector<8x32xf32>
    %48 = vector.extract_strided_slice %45 {offsets = [0, 0], sizes = [8, 32], strides = [1, 1]} : vector<8x96xf32> to vector<8x32xf32>
    %49 = vector.extract_strided_slice %45 {offsets = [0, 32], sizes = [8, 32], strides = [1, 1]} : vector<8x96xf32> to vector<8x32xf32>
    %50 = vector.extract_strided_slice %45 {offsets = [0, 64], sizes = [8, 32], strides = [1, 1]} : vector<8x96xf32> to vector<8x32xf32>
    %51 = arith.mulf %49, %29 : vector<8x32xf32>
    %52 = arith.mulf %48, %47 : vector<8x32xf32>
    %53 = arith.addf %51, %52 : vector<8x32xf32>
    %54 = math.tanh %53 : vector<8x32xf32>
    %55 = arith.mulf %50, %54 : vector<8x32xf32>
    %56 = arith.index_cast %35 : i32 to index
    %c0_19 = arith.constant 0 : index
    %57 = vector.load %arg10[%56, %c0_19] : memref<64x32xf32, #tpu.memory_space<vmem>>, vector<8x32xf32>
    tpu.vector_store %arg10[%56, %c0_19], %55 {strides = array<i32>} : memref<64x32xf32, #tpu.memory_space<vmem>>, vector<8x32xf32>,
    %c2_i32 = arith.constant 2 : i32
    %c8_i32_20 = arith.constant 8 : i32
    %58 = arith.muli %c2_i32, %c8_i32_20 : i32
    %59 = tpu.assume_multiple %58, 8 : i32
    %60 = arith.index_cast %59 : i32 to index
    %c0_21 = arith.constant 0 : index
    %61 = vector.load %arg11[%60, %c0_21] : memref<64x128xf32, #tpu.memory_space<vmem>>, vector<8x128xf32>
    %cst_22 = arith.constant dense<0.000000e+00> : vector<8x128xf32>
    %62 = tpu.matmul %55, %7, %cst_22 {dimension_numbers = #tpu.dot_dimension_numbers<[1], [0], [0], [1], [0, 0, 1, 1], [], []>} : vector<8x32xf32>, vector<32x128xf32>, vector<8x128xf32> -> vector<8x128xf32>
    %63 = arith.addf %61, %62 : vector<8x128xf32>
    %64 = vector.extract_strided_slice %63 {offsets = [0, 0], sizes = [8, 96], strides = [1, 1]} : vector<8x128xf32> to vector<8x96xf32>
    %65 = arith.negf %64 : vector<8x96xf32>
    %66 = math.exp %65 : vector<8x96xf32>
    %cst_23 = arith.constant 1.000000e+00 : f32
    %67 = vector.broadcast %cst_23 : f32 to vector<8x96xf32>
    %68 = arith.addf %67, %66 : vector<8x96xf32>
    %69 = arith.divf %67, %68 : vector<8x96xf32>
    %70 = vector.extract_strided_slice %63 {offsets = [0, 96], sizes = [8, 32], strides = [1, 1]} : vector<8x128xf32> to vector<8x32xf32>
    %71 = math.tanh %70 : vector<8x32xf32>
    %72 = vector.extract_strided_slice %69 {offsets = [0, 0], sizes = [8, 32], strides = [1, 1]} : vector<8x96xf32> to vector<8x32xf32>
    %73 = vector.extract_strided_slice %69 {offsets = [0, 32], sizes = [8, 32], strides = [1, 1]} : vector<8x96xf32> to vector<8x32xf32>
    %74 = vector.extract_strided_slice %69 {offsets = [0, 64], sizes = [8, 32], strides = [1, 1]} : vector<8x96xf32> to vector<8x32xf32>
    %75 = arith.mulf %73, %53 : vector<8x32xf32>
    %76 = arith.mulf %72, %71 : vector<8x32xf32>
    %77 = arith.addf %75, %76 : vector<8x32xf32>
    %78 = math.tanh %77 : vector<8x32xf32>
    %79 = arith.mulf %74, %78 : vector<8x32xf32>
    %80 = arith.index_cast %59 : i32 to index
    %c0_24 = arith.constant 0 : index
    %81 = vector.load %arg10[%80, %c0_24] : memref<64x32xf32, #tpu.memory_space<vmem>>, vector<8x32xf32>
    tpu.vector_store %arg10[%80, %c0_24], %79 {strides = array<i32>} : memref<64x32xf32, #tpu.memory_space<vmem>>, vector<8x32xf32>,
    %c3_i32 = arith.constant 3 : i32
    %c8_i32_25 = arith.constant 8 : i32
    %82 = arith.muli %c3_i32, %c8_i32_25 : i32
    %83 = tpu.assume_multiple %82, 8 : i32
    %84 = arith.index_cast %83 : i32 to index
    %c0_26 = arith.constant 0 : index
    %85 = vector.load %arg11[%84, %c0_26] : memref<64x128xf32, #tpu.memory_space<vmem>>, vector<8x128xf32>
    %cst_27 = arith.constant dense<0.000000e+00> : vector<8x128xf32>
    %86 = tpu.matmul %79, %7, %cst_27 {dimension_numbers = #tpu.dot_dimension_numbers<[1], [0], [0], [1], [0, 0, 1, 1], [], []>} : vector<8x32xf32>, vector<32x128xf32>, vector<8x128xf32> -> vector<8x128xf32>
    %87 = arith.addf %85, %86 : vector<8x128xf32>
    %88 = vector.extract_strided_slice %87 {offsets = [0, 0], sizes = [8, 96], strides = [1, 1]} : vector<8x128xf32> to vector<8x96xf32>
    %89 = arith.negf %88 : vector<8x96xf32>
    %90 = math.exp %89 : vector<8x96xf32>
    %cst_28 = arith.constant 1.000000e+00 : f32
    %91 = vector.broadcast %cst_28 : f32 to vector<8x96xf32>
    %92 = arith.addf %91, %90 : vector<8x96xf32>
    %93 = arith.divf %91, %92 : vector<8x96xf32>
    %94 = vector.extract_strided_slice %87 {offsets = [0, 96], sizes = [8, 32], strides = [1, 1]} : vector<8x128xf32> to vector<8x32xf32>
    %95 = math.tanh %94 : vector<8x32xf32>
    %96 = vector.extract_strided_slice %93 {offsets = [0, 0], sizes = [8, 32], strides = [1, 1]} : vector<8x96xf32> to vector<8x32xf32>
    %97 = vector.extract_strided_slice %93 {offsets = [0, 32], sizes = [8, 32], strides = [1, 1]} : vector<8x96xf32> to vector<8x32xf32>
    %98 = vector.extract_strided_slice %93 {offsets = [0, 64], sizes = [8, 32], strides = [1, 1]} : vector<8x96xf32> to vector<8x32xf32>
    %99 = arith.mulf %97, %77 : vector<8x32xf32>
    %100 = arith.mulf %96, %95 : vector<8x32xf32>
    %101 = arith.addf %99, %100 : vector<8x32xf32>
    %102 = math.tanh %101 : vector<8x32xf32>
    %103 = arith.mulf %98, %102 : vector<8x32xf32>
    %104 = arith.index_cast %83 : i32 to index
    %c0_29 = arith.constant 0 : index
    %105 = vector.load %arg10[%104, %c0_29] : memref<64x32xf32, #tpu.memory_space<vmem>>, vector<8x32xf32>
    tpu.vector_store %arg10[%104, %c0_29], %103 {strides = array<i32>} : memref<64x32xf32, #tpu.memory_space<vmem>>, vector<8x32xf32>,
    %c4_i32 = arith.constant 4 : i32
    %c8_i32_30 = arith.constant 8 : i32
    %106 = arith.muli %c4_i32, %c8_i32_30 : i32
    %107 = tpu.assume_multiple %106, 8 : i32
    %108 = arith.index_cast %107 : i32 to index
    %c0_31 = arith.constant 0 : index
    %109 = vector.load %arg11[%108, %c0_31] : memref<64x128xf32, #tpu.memory_space<vmem>>, vector<8x128xf32>
    %cst_32 = arith.constant dense<0.000000e+00> : vector<8x128xf32>
    %110 = tpu.matmul %103, %7, %cst_32 {dimension_numbers = #tpu.dot_dimension_numbers<[1], [0], [0], [1], [0, 0, 1, 1], [], []>} : vector<8x32xf32>, vector<32x128xf32>, vector<8x128xf32> -> vector<8x128xf32>
    %111 = arith.addf %109, %110 : vector<8x128xf32>
    %112 = vector.extract_strided_slice %111 {offsets = [0, 0], sizes = [8, 96], strides = [1, 1]} : vector<8x128xf32> to vector<8x96xf32>
    %113 = arith.negf %112 : vector<8x96xf32>
    %114 = math.exp %113 : vector<8x96xf32>
    %cst_33 = arith.constant 1.000000e+00 : f32
    %115 = vector.broadcast %cst_33 : f32 to vector<8x96xf32>
    %116 = arith.addf %115, %114 : vector<8x96xf32>
    %117 = arith.divf %115, %116 : vector<8x96xf32>
    %118 = vector.extract_strided_slice %111 {offsets = [0, 96], sizes = [8, 32], strides = [1, 1]} : vector<8x128xf32> to vector<8x32xf32>
    %119 = math.tanh %118 : vector<8x32xf32>
    %120 = vector.extract_strided_slice %117 {offsets = [0, 0], sizes = [8, 32], strides = [1, 1]} : vector<8x96xf32> to vector<8x32xf32>
    %121 = vector.extract_strided_slice %117 {offsets = [0, 32], sizes = [8, 32], strides = [1, 1]} : vector<8x96xf32> to vector<8x32xf32>
    %122 = vector.extract_strided_slice %117 {offsets = [0, 64], sizes = [8, 32], strides = [1, 1]} : vector<8x96xf32> to vector<8x32xf32>
    %123 = arith.mulf %121, %101 : vector<8x32xf32>
    %124 = arith.mulf %120, %119 : vector<8x32xf32>
    %125 = arith.addf %123, %124 : vector<8x32xf32>
    %126 = math.tanh %125 : vector<8x32xf32>
    %127 = arith.mulf %122, %126 : vector<8x32xf32>
    %128 = arith.index_cast %107 : i32 to index
    %c0_34 = arith.constant 0 : index
    %129 = vector.load %arg10[%128, %c0_34] : memref<64x32xf32, #tpu.memory_space<vmem>>, vector<8x32xf32>
    tpu.vector_store %arg10[%128, %c0_34], %127 {strides = array<i32>} : memref<64x32xf32, #tpu.memory_space<vmem>>, vector<8x32xf32>,
    %c5_i32 = arith.constant 5 : i32
    %c8_i32_35 = arith.constant 8 : i32
    %130 = arith.muli %c5_i32, %c8_i32_35 : i32
    %131 = tpu.assume_multiple %130, 8 : i32
    %132 = arith.index_cast %131 : i32 to index
    %c0_36 = arith.constant 0 : index
    %133 = vector.load %arg11[%132, %c0_36] : memref<64x128xf32, #tpu.memory_space<vmem>>, vector<8x128xf32>
    %cst_37 = arith.constant dense<0.000000e+00> : vector<8x128xf32>
    %134 = tpu.matmul %127, %7, %cst_37 {dimension_numbers = #tpu.dot_dimension_numbers<[1], [0], [0], [1], [0, 0, 1, 1], [], []>} : vector<8x32xf32>, vector<32x128xf32>, vector<8x128xf32> -> vector<8x128xf32>
    %135 = arith.addf %133, %134 : vector<8x128xf32>
    %136 = vector.extract_strided_slice %135 {offsets = [0, 0], sizes = [8, 96], strides = [1, 1]} : vector<8x128xf32> to vector<8x96xf32>
    %137 = arith.negf %136 : vector<8x96xf32>
    %138 = math.exp %137 : vector<8x96xf32>
    %cst_38 = arith.constant 1.000000e+00 : f32
    %139 = vector.broadcast %cst_38 : f32 to vector<8x96xf32>
    %140 = arith.addf %139, %138 : vector<8x96xf32>
    %141 = arith.divf %139, %140 : vector<8x96xf32>
    %142 = vector.extract_strided_slice %135 {offsets = [0, 96], sizes = [8, 32], strides = [1, 1]} : vector<8x128xf32> to vector<8x32xf32>
    %143 = math.tanh %142 : vector<8x32xf32>
    %144 = vector.extract_strided_slice %141 {offsets = [0, 0], sizes = [8, 32], strides = [1, 1]} : vector<8x96xf32> to vector<8x32xf32>
    %145 = vector.extract_strided_slice %141 {offsets = [0, 32], sizes = [8, 32], strides = [1, 1]} : vector<8x96xf32> to vector<8x32xf32>
    %146 = vector.extract_strided_slice %141 {offsets = [0, 64], sizes = [8, 32], strides = [1, 1]} : vector<8x96xf32> to vector<8x32xf32>
    %147 = arith.mulf %145, %125 : vector<8x32xf32>
    %148 = arith.mulf %144, %143 : vector<8x32xf32>
    %149 = arith.addf %147, %148 : vector<8x32xf32>
    %150 = math.tanh %149 : vector<8x32xf32>
    %151 = arith.mulf %146, %150 : vector<8x32xf32>
    %152 = arith.index_cast %131 : i32 to index
    %c0_39 = arith.constant 0 : index
    %153 = vector.load %arg10[%152, %c0_39] : memref<64x32xf32, #tpu.memory_space<vmem>>, vector<8x32xf32>
    tpu.vector_store %arg10[%152, %c0_39], %151 {strides = array<i32>} : memref<64x32xf32, #tpu.memory_space<vmem>>, vector<8x32xf32>,
    %c6_i32 = arith.constant 6 : i32
    %c8_i32_40 = arith.constant 8 : i32
    %154 = arith.muli %c6_i32, %c8_i32_40 : i32
    %155 = tpu.assume_multiple %154, 8 : i32
    %156 = arith.index_cast %155 : i32 to index
    %c0_41 = arith.constant 0 : index
    %157 = vector.load %arg11[%156, %c0_41] : memref<64x128xf32, #tpu.memory_space<vmem>>, vector<8x128xf32>
    %cst_42 = arith.constant dense<0.000000e+00> : vector<8x128xf32>
    %158 = tpu.matmul %151, %7, %cst_42 {dimension_numbers = #tpu.dot_dimension_numbers<[1], [0], [0], [1], [0, 0, 1, 1], [], []>} : vector<8x32xf32>, vector<32x128xf32>, vector<8x128xf32> -> vector<8x128xf32>
    %159 = arith.addf %157, %158 : vector<8x128xf32>
    %160 = vector.extract_strided_slice %159 {offsets = [0, 0], sizes = [8, 96], strides = [1, 1]} : vector<8x128xf32> to vector<8x96xf32>
    %161 = arith.negf %160 : vector<8x96xf32>
    %162 = math.exp %161 : vector<8x96xf32>
    %cst_43 = arith.constant 1.000000e+00 : f32
    %163 = vector.broadcast %cst_43 : f32 to vector<8x96xf32>
    %164 = arith.addf %163, %162 : vector<8x96xf32>
    %165 = arith.divf %163, %164 : vector<8x96xf32>
    %166 = vector.extract_strided_slice %159 {offsets = [0, 96], sizes = [8, 32], strides = [1, 1]} : vector<8x128xf32> to vector<8x32xf32>
    %167 = math.tanh %166 : vector<8x32xf32>
    %168 = vector.extract_strided_slice %165 {offsets = [0, 0], sizes = [8, 32], strides = [1, 1]} : vector<8x96xf32> to vector<8x32xf32>
    %169 = vector.extract_strided_slice %165 {offsets = [0, 32], sizes = [8, 32], strides = [1, 1]} : vector<8x96xf32> to vector<8x32xf32>
    %170 = vector.extract_strided_slice %165 {offsets = [0, 64], sizes = [8, 32], strides = [1, 1]} : vector<8x96xf32> to vector<8x32xf32>
    %171 = arith.mulf %169, %149 : vector<8x32xf32>
    %172 = arith.mulf %168, %167 : vector<8x32xf32>
    %173 = arith.addf %171, %172 : vector<8x32xf32>
    %174 = math.tanh %173 : vector<8x32xf32>
    %175 = arith.mulf %170, %174 : vector<8x32xf32>
    %176 = arith.index_cast %155 : i32 to index
    %c0_44 = arith.constant 0 : index
    %177 = vector.load %arg10[%176, %c0_44] : memref<64x32xf32, #tpu.memory_space<vmem>>, vector<8x32xf32>
    tpu.vector_store %arg10[%176, %c0_44], %175 {strides = array<i32>} : memref<64x32xf32, #tpu.memory_space<vmem>>, vector<8x32xf32>,
    %c7_i32 = arith.constant 7 : i32
    %c8_i32_45 = arith.constant 8 : i32
    %178 = arith.muli %c7_i32, %c8_i32_45 : i32
    %179 = tpu.assume_multiple %178, 8 : i32
    %180 = arith.index_cast %179 : i32 to index
    %c0_46 = arith.constant 0 : index
    %181 = vector.load %arg11[%180, %c0_46] : memref<64x128xf32, #tpu.memory_space<vmem>>, vector<8x128xf32>
    %cst_47 = arith.constant dense<0.000000e+00> : vector<8x128xf32>
    %182 = tpu.matmul %175, %7, %cst_47 {dimension_numbers = #tpu.dot_dimension_numbers<[1], [0], [0], [1], [0, 0, 1, 1], [], []>} : vector<8x32xf32>, vector<32x128xf32>, vector<8x128xf32> -> vector<8x128xf32>
    %183 = arith.addf %181, %182 : vector<8x128xf32>
    %184 = vector.extract_strided_slice %183 {offsets = [0, 0], sizes = [8, 96], strides = [1, 1]} : vector<8x128xf32> to vector<8x96xf32>
    %185 = arith.negf %184 : vector<8x96xf32>
    %186 = math.exp %185 : vector<8x96xf32>
    %cst_48 = arith.constant 1.000000e+00 : f32
    %187 = vector.broadcast %cst_48 : f32 to vector<8x96xf32>
    %188 = arith.addf %187, %186 : vector<8x96xf32>
    %189 = arith.divf %187, %188 : vector<8x96xf32>
    %190 = vector.extract_strided_slice %183 {offsets = [0, 96], sizes = [8, 32], strides = [1, 1]} : vector<8x128xf32> to vector<8x32xf32>
    %191 = math.tanh %190 : vector<8x32xf32>
    %192 = vector.extract_strided_slice %189 {offsets = [0, 0], sizes = [8, 32], strides = [1, 1]} : vector<8x96xf32> to vector<8x32xf32>
    %193 = vector.extract_strided_slice %189 {offsets = [0, 32], sizes = [8, 32], strides = [1, 1]} : vector<8x96xf32> to vector<8x32xf32>
    %194 = vector.extract_strided_slice %189 {offsets = [0, 64], sizes = [8, 32], strides = [1, 1]} : vector<8x96xf32> to vector<8x32xf32>
    %195 = arith.mulf %193, %173 : vector<8x32xf32>
    %196 = arith.mulf %192, %191 : vector<8x32xf32>
    %197 = arith.addf %195, %196 : vector<8x32xf32>
    %198 = math.tanh %197 : vector<8x32xf32>
    %199 = arith.mulf %194, %198 : vector<8x32xf32>
    %200 = arith.index_cast %179 : i32 to index
    %c0_49 = arith.constant 0 : index
    %201 = vector.load %arg10[%200, %c0_49] : memref<64x32xf32, #tpu.memory_space<vmem>>, vector<8x32xf32>
    tpu.vector_store %arg10[%200, %c0_49], %199 {strides = array<i32>} : memref<64x32xf32, #tpu.memory_space<vmem>>, vector<8x32xf32>,
    %c8_i32_50 = arith.constant 8 : i32
    %c0_51 = arith.constant 0 : index
    %c0_52 = arith.constant 0 : index
    %202 = vector.load %arg10[%c0_51, %c0_52] : memref<64x32xf32, #tpu.memory_space<vmem>>, vector<64x32xf32>
    %c0_53 = arith.constant 0 : index
    %c0_54 = arith.constant 0 : index
    %203 = vector.load %arg4[%c0_53, %c0_54] : memref<32x128xf32, #tpu.memory_space<vmem>>, vector<32x128xf32>
    %cst_55 = arith.constant dense<0.000000e+00> : vector<64x128xf32>
    %204 = tpu.matmul %202, %203, %cst_55 {dimension_numbers = #tpu.dot_dimension_numbers<[1], [0], [0], [1], [0, 0, 1, 1], [], []>} : vector<64x32xf32>, vector<32x128xf32>, vector<64x128xf32> -> vector<64x128xf32>
    %c0_56 = arith.constant 0 : index
    %c0_57 = arith.constant 0 : index
    %205 = vector.load %arg6[%c0_56, %c0_57] : memref<1x128xf32, #tpu.memory_space<vmem>>, vector<1x128xf32>
    %206 = vector.broadcast %205 : vector<1x128xf32> to vector<64x128xf32>
    %207 = arith.addf %204, %206 : vector<64x128xf32>
    %c0_58 = arith.constant 0 : index
    %c0_59 = arith.constant 0 : index
    %208 = vector.load %arg11[%c0_58, %c0_59] : memref<64x128xf32, #tpu.memory_space<vmem>>, vector<64x128xf32>
    tpu.vector_store %arg11[%c0_58, %c0_59], %207 {strides = array<i32>} : memref<64x128xf32, #tpu.memory_space<vmem>>, vector<64x128xf32>,
    %c0_60 = arith.constant 0 : index
    %c0_61 = arith.constant 0 : index
    %209 = vector.load %arg5[%c0_60, %c0_61] : memref<32x128xf32, #tpu.memory_space<vmem>>, vector<32x128xf32>
    %cst_62 = arith.constant 0.000000e+00 : f32
    %210 = vector.broadcast %cst_62 : f32 to vector<8x32xf32>
    %cst_63 = arith.constant 0.000000e+00 : f32
    %211 = vector.broadcast %cst_63 : f32 to vector<8x32xf32>
    %c0_i32_64 = arith.constant 0 : i32
    %c8_i32_65 = arith.constant 8 : i32
    %212 = arith.muli %c0_i32_64, %c8_i32_65 : i32
    %213 = tpu.assume_multiple %212, 8 : i32
    %214 = arith.index_cast %213 : i32 to index
    %c0_66 = arith.constant 0 : index
    %215 = vector.load %arg11[%214, %c0_66] : memref<64x128xf32, #tpu.memory_space<vmem>>, vector<8x128xf32>
    %cst_67 = arith.constant dense<0.000000e+00> : vector<8x128xf32>
    %216 = tpu.matmul %210, %209, %cst_67 {dimension_numbers = #tpu.dot_dimension_numbers<[1], [0], [0], [1], [0, 0, 1, 1], [], []>} : vector<8x32xf32>, vector<32x128xf32>, vector<8x128xf32> -> vector<8x128xf32>
    %217 = arith.addf %215, %216 : vector<8x128xf32>
    %218 = vector.extract_strided_slice %217 {offsets = [0, 0], sizes = [8, 96], strides = [1, 1]} : vector<8x128xf32> to vector<8x96xf32>
    %219 = arith.negf %218 : vector<8x96xf32>
    %220 = math.exp %219 : vector<8x96xf32>
    %cst_68 = arith.constant 1.000000e+00 : f32
    %221 = vector.broadcast %cst_68 : f32 to vector<8x96xf32>
    %222 = arith.addf %221, %220 : vector<8x96xf32>
    %223 = arith.divf %221, %222 : vector<8x96xf32>
    %224 = vector.extract_strided_slice %217 {offsets = [0, 96], sizes = [8, 32], strides = [1, 1]} : vector<8x128xf32> to vector<8x32xf32>
    %225 = math.tanh %224 : vector<8x32xf32>
    %226 = vector.extract_strided_slice %223 {offsets = [0, 0], sizes = [8, 32], strides = [1, 1]} : vector<8x96xf32> to vector<8x32xf32>
    %227 = vector.extract_strided_slice %223 {offsets = [0, 32], sizes = [8, 32], strides = [1, 1]} : vector<8x96xf32> to vector<8x32xf32>
    %228 = vector.extract_strided_slice %223 {offsets = [0, 64], sizes = [8, 32], strides = [1, 1]} : vector<8x96xf32> to vector<8x32xf32>
    %229 = arith.mulf %227, %211 : vector<8x32xf32>
    %230 = arith.mulf %226, %225 : vector<8x32xf32>
    %231 = arith.addf %229, %230 : vector<8x32xf32>
    %232 = math.tanh %231 : vector<8x32xf32>
    %233 = arith.mulf %228, %232 : vector<8x32xf32>
    %234 = arith.index_cast %213 : i32 to index
    %c0_69 = arith.constant 0 : index
    %235 = vector.load %arg10[%234, %c0_69] : memref<64x32xf32, #tpu.memory_space<vmem>>, vector<8x32xf32>
    tpu.vector_store %arg10[%234, %c0_69], %233 {strides = array<i32>} : memref<64x32xf32, #tpu.memory_space<vmem>>, vector<8x32xf32>,
    %c1_i32_70 = arith.constant 1 : i32
    %c8_i32_71 = arith.constant 8 : i32
    %236 = arith.muli %c1_i32_70, %c8_i32_71 : i32
    %237 = tpu.assume_multiple %236, 8 : i32
    %238 = arith.index_cast %237 : i32 to index
    %c0_72 = arith.constant 0 : index
    %239 = vector.load %arg11[%238, %c0_72] : memref<64x128xf32, #tpu.memory_space<vmem>>, vector<8x128xf32>
    %cst_73 = arith.constant dense<0.000000e+00> : vector<8x128xf32>
    %240 = tpu.matmul %233, %209, %cst_73 {dimension_numbers = #tpu.dot_dimension_numbers<[1], [0], [0], [1], [0, 0, 1, 1], [], []>} : vector<8x32xf32>, vector<32x128xf32>, vector<8x128xf32> -> vector<8x128xf32>
    %241 = arith.addf %239, %240 : vector<8x128xf32>
    %242 = vector.extract_strided_slice %241 {offsets = [0, 0], sizes = [8, 96], strides = [1, 1]} : vector<8x128xf32> to vector<8x96xf32>
    %243 = arith.negf %242 : vector<8x96xf32>
    %244 = math.exp %243 : vector<8x96xf32>
    %cst_74 = arith.constant 1.000000e+00 : f32
    %245 = vector.broadcast %cst_74 : f32 to vector<8x96xf32>
    %246 = arith.addf %245, %244 : vector<8x96xf32>
    %247 = arith.divf %245, %246 : vector<8x96xf32>
    %248 = vector.extract_strided_slice %241 {offsets = [0, 96], sizes = [8, 32], strides = [1, 1]} : vector<8x128xf32> to vector<8x32xf32>
    %249 = math.tanh %248 : vector<8x32xf32>
    %250 = vector.extract_strided_slice %247 {offsets = [0, 0], sizes = [8, 32], strides = [1, 1]} : vector<8x96xf32> to vector<8x32xf32>
    %251 = vector.extract_strided_slice %247 {offsets = [0, 32], sizes = [8, 32], strides = [1, 1]} : vector<8x96xf32> to vector<8x32xf32>
    %252 = vector.extract_strided_slice %247 {offsets = [0, 64], sizes = [8, 32], strides = [1, 1]} : vector<8x96xf32> to vector<8x32xf32>
    %253 = arith.mulf %251, %231 : vector<8x32xf32>
    %254 = arith.mulf %250, %249 : vector<8x32xf32>
    %255 = arith.addf %253, %254 : vector<8x32xf32>
    %256 = math.tanh %255 : vector<8x32xf32>
    %257 = arith.mulf %252, %256 : vector<8x32xf32>
    %258 = arith.index_cast %237 : i32 to index
    %c0_75 = arith.constant 0 : index
    %259 = vector.load %arg10[%258, %c0_75] : memref<64x32xf32, #tpu.memory_space<vmem>>, vector<8x32xf32>
    tpu.vector_store %arg10[%258, %c0_75], %257 {strides = array<i32>} : memref<64x32xf32, #tpu.memory_space<vmem>>, vector<8x32xf32>,
    %c2_i32_76 = arith.constant 2 : i32
    %c8_i32_77 = arith.constant 8 : i32
    %260 = arith.muli %c2_i32_76, %c8_i32_77 : i32
    %261 = tpu.assume_multiple %260, 8 : i32
    %262 = arith.index_cast %261 : i32 to index
    %c0_78 = arith.constant 0 : index
    %263 = vector.load %arg11[%262, %c0_78] : memref<64x128xf32, #tpu.memory_space<vmem>>, vector<8x128xf32>
    %cst_79 = arith.constant dense<0.000000e+00> : vector<8x128xf32>
    %264 = tpu.matmul %257, %209, %cst_79 {dimension_numbers = #tpu.dot_dimension_numbers<[1], [0], [0], [1], [0, 0, 1, 1], [], []>} : vector<8x32xf32>, vector<32x128xf32>, vector<8x128xf32> -> vector<8x128xf32>
    %265 = arith.addf %263, %264 : vector<8x128xf32>
    %266 = vector.extract_strided_slice %265 {offsets = [0, 0], sizes = [8, 96], strides = [1, 1]} : vector<8x128xf32> to vector<8x96xf32>
    %267 = arith.negf %266 : vector<8x96xf32>
    %268 = math.exp %267 : vector<8x96xf32>
    %cst_80 = arith.constant 1.000000e+00 : f32
    %269 = vector.broadcast %cst_80 : f32 to vector<8x96xf32>
    %270 = arith.addf %269, %268 : vector<8x96xf32>
    %271 = arith.divf %269, %270 : vector<8x96xf32>
    %272 = vector.extract_strided_slice %265 {offsets = [0, 96], sizes = [8, 32], strides = [1, 1]} : vector<8x128xf32> to vector<8x32xf32>
    %273 = math.tanh %272 : vector<8x32xf32>
    %274 = vector.extract_strided_slice %271 {offsets = [0, 0], sizes = [8, 32], strides = [1, 1]} : vector<8x96xf32> to vector<8x32xf32>
    %275 = vector.extract_strided_slice %271 {offsets = [0, 32], sizes = [8, 32], strides = [1, 1]} : vector<8x96xf32> to vector<8x32xf32>
    %276 = vector.extract_strided_slice %271 {offsets = [0, 64], sizes = [8, 32], strides = [1, 1]} : vector<8x96xf32> to vector<8x32xf32>
    %277 = arith.mulf %275, %255 : vector<8x32xf32>
    %278 = arith.mulf %274, %273 : vector<8x32xf32>
    %279 = arith.addf %277, %278 : vector<8x32xf32>
    %280 = math.tanh %279 : vector<8x32xf32>
    %281 = arith.mulf %276, %280 : vector<8x32xf32>
    %282 = arith.index_cast %261 : i32 to index
    %c0_81 = arith.constant 0 : index
    %283 = vector.load %arg10[%282, %c0_81] : memref<64x32xf32, #tpu.memory_space<vmem>>, vector<8x32xf32>
    tpu.vector_store %arg10[%282, %c0_81], %281 {strides = array<i32>} : memref<64x32xf32, #tpu.memory_space<vmem>>, vector<8x32xf32>,
    %c3_i32_82 = arith.constant 3 : i32
    %c8_i32_83 = arith.constant 8 : i32
    %284 = arith.muli %c3_i32_82, %c8_i32_83 : i32
    %285 = tpu.assume_multiple %284, 8 : i32
    %286 = arith.index_cast %285 : i32 to index
    %c0_84 = arith.constant 0 : index
    %287 = vector.load %arg11[%286, %c0_84] : memref<64x128xf32, #tpu.memory_space<vmem>>, vector<8x128xf32>
    %cst_85 = arith.constant dense<0.000000e+00> : vector<8x128xf32>
    %288 = tpu.matmul %281, %209, %cst_85 {dimension_numbers = #tpu.dot_dimension_numbers<[1], [0], [0], [1], [0, 0, 1, 1], [], []>} : vector<8x32xf32>, vector<32x128xf32>, vector<8x128xf32> -> vector<8x128xf32>
    %289 = arith.addf %287, %288 : vector<8x128xf32>
    %290 = vector.extract_strided_slice %289 {offsets = [0, 0], sizes = [8, 96], strides = [1, 1]} : vector<8x128xf32> to vector<8x96xf32>
    %291 = arith.negf %290 : vector<8x96xf32>
    %292 = math.exp %291 : vector<8x96xf32>
    %cst_86 = arith.constant 1.000000e+00 : f32
    %293 = vector.broadcast %cst_86 : f32 to vector<8x96xf32>
    %294 = arith.addf %293, %292 : vector<8x96xf32>
    %295 = arith.divf %293, %294 : vector<8x96xf32>
    %296 = vector.extract_strided_slice %289 {offsets = [0, 96], sizes = [8, 32], strides = [1, 1]} : vector<8x128xf32> to vector<8x32xf32>
    %297 = math.tanh %296 : vector<8x32xf32>
    %298 = vector.extract_strided_slice %295 {offsets = [0, 0], sizes = [8, 32], strides = [1, 1]} : vector<8x96xf32> to vector<8x32xf32>
    %299 = vector.extract_strided_slice %295 {offsets = [0, 32], sizes = [8, 32], strides = [1, 1]} : vector<8x96xf32> to vector<8x32xf32>
    %300 = vector.extract_strided_slice %295 {offsets = [0, 64], sizes = [8, 32], strides = [1, 1]} : vector<8x96xf32> to vector<8x32xf32>
    %301 = arith.mulf %299, %279 : vector<8x32xf32>
    %302 = arith.mulf %298, %297 : vector<8x32xf32>
    %303 = arith.addf %301, %302 : vector<8x32xf32>
    %304 = math.tanh %303 : vector<8x32xf32>
    %305 = arith.mulf %300, %304 : vector<8x32xf32>
    %306 = arith.index_cast %285 : i32 to index
    %c0_87 = arith.constant 0 : index
    %307 = vector.load %arg10[%306, %c0_87] : memref<64x32xf32, #tpu.memory_space<vmem>>, vector<8x32xf32>
    tpu.vector_store %arg10[%306, %c0_87], %305 {strides = array<i32>} : memref<64x32xf32, #tpu.memory_space<vmem>>, vector<8x32xf32>,
    %c4_i32_88 = arith.constant 4 : i32
    %c8_i32_89 = arith.constant 8 : i32
    %308 = arith.muli %c4_i32_88, %c8_i32_89 : i32
    %309 = tpu.assume_multiple %308, 8 : i32
    %310 = arith.index_cast %309 : i32 to index
    %c0_90 = arith.constant 0 : index
    %311 = vector.load %arg11[%310, %c0_90] : memref<64x128xf32, #tpu.memory_space<vmem>>, vector<8x128xf32>
    %cst_91 = arith.constant dense<0.000000e+00> : vector<8x128xf32>
    %312 = tpu.matmul %305, %209, %cst_91 {dimension_numbers = #tpu.dot_dimension_numbers<[1], [0], [0], [1], [0, 0, 1, 1], [], []>} : vector<8x32xf32>, vector<32x128xf32>, vector<8x128xf32> -> vector<8x128xf32>
    %313 = arith.addf %311, %312 : vector<8x128xf32>
    %314 = vector.extract_strided_slice %313 {offsets = [0, 0], sizes = [8, 96], strides = [1, 1]} : vector<8x128xf32> to vector<8x96xf32>
    %315 = arith.negf %314 : vector<8x96xf32>
    %316 = math.exp %315 : vector<8x96xf32>
    %cst_92 = arith.constant 1.000000e+00 : f32
    %317 = vector.broadcast %cst_92 : f32 to vector<8x96xf32>
    %318 = arith.addf %317, %316 : vector<8x96xf32>
    %319 = arith.divf %317, %318 : vector<8x96xf32>
    %320 = vector.extract_strided_slice %313 {offsets = [0, 96], sizes = [8, 32], strides = [1, 1]} : vector<8x128xf32> to vector<8x32xf32>
    %321 = math.tanh %320 : vector<8x32xf32>
    %322 = vector.extract_strided_slice %319 {offsets = [0, 0], sizes = [8, 32], strides = [1, 1]} : vector<8x96xf32> to vector<8x32xf32>
    %323 = vector.extract_strided_slice %319 {offsets = [0, 32], sizes = [8, 32], strides = [1, 1]} : vector<8x96xf32> to vector<8x32xf32>
    %324 = vector.extract_strided_slice %319 {offsets = [0, 64], sizes = [8, 32], strides = [1, 1]} : vector<8x96xf32> to vector<8x32xf32>
    %325 = arith.mulf %323, %303 : vector<8x32xf32>
    %326 = arith.mulf %322, %321 : vector<8x32xf32>
    %327 = arith.addf %325, %326 : vector<8x32xf32>
    %328 = math.tanh %327 : vector<8x32xf32>
    %329 = arith.mulf %324, %328 : vector<8x32xf32>
    %330 = arith.index_cast %309 : i32 to index
    %c0_93 = arith.constant 0 : index
    %331 = vector.load %arg10[%330, %c0_93] : memref<64x32xf32, #tpu.memory_space<vmem>>, vector<8x32xf32>
    tpu.vector_store %arg10[%330, %c0_93], %329 {strides = array<i32>} : memref<64x32xf32, #tpu.memory_space<vmem>>, vector<8x32xf32>,
    %c5_i32_94 = arith.constant 5 : i32
    %c8_i32_95 = arith.constant 8 : i32
    %332 = arith.muli %c5_i32_94, %c8_i32_95 : i32
    %333 = tpu.assume_multiple %332, 8 : i32
    %334 = arith.index_cast %333 : i32 to index
    %c0_96 = arith.constant 0 : index
    %335 = vector.load %arg11[%334, %c0_96] : memref<64x128xf32, #tpu.memory_space<vmem>>, vector<8x128xf32>
    %cst_97 = arith.constant dense<0.000000e+00> : vector<8x128xf32>
    %336 = tpu.matmul %329, %209, %cst_97 {dimension_numbers = #tpu.dot_dimension_numbers<[1], [0], [0], [1], [0, 0, 1, 1], [], []>} : vector<8x32xf32>, vector<32x128xf32>, vector<8x128xf32> -> vector<8x128xf32>
    %337 = arith.addf %335, %336 : vector<8x128xf32>
    %338 = vector.extract_strided_slice %337 {offsets = [0, 0], sizes = [8, 96], strides = [1, 1]} : vector<8x128xf32> to vector<8x96xf32>
    %339 = arith.negf %338 : vector<8x96xf32>
    %340 = math.exp %339 : vector<8x96xf32>
    %cst_98 = arith.constant 1.000000e+00 : f32
    %341 = vector.broadcast %cst_98 : f32 to vector<8x96xf32>
    %342 = arith.addf %341, %340 : vector<8x96xf32>
    %343 = arith.divf %341, %342 : vector<8x96xf32>
    %344 = vector.extract_strided_slice %337 {offsets = [0, 96], sizes = [8, 32], strides = [1, 1]} : vector<8x128xf32> to vector<8x32xf32>
    %345 = math.tanh %344 : vector<8x32xf32>
    %346 = vector.extract_strided_slice %343 {offsets = [0, 0], sizes = [8, 32], strides = [1, 1]} : vector<8x96xf32> to vector<8x32xf32>
    %347 = vector.extract_strided_slice %343 {offsets = [0, 32], sizes = [8, 32], strides = [1, 1]} : vector<8x96xf32> to vector<8x32xf32>
    %348 = vector.extract_strided_slice %343 {offsets = [0, 64], sizes = [8, 32], strides = [1, 1]} : vector<8x96xf32> to vector<8x32xf32>
    %349 = arith.mulf %347, %327 : vector<8x32xf32>
    %350 = arith.mulf %346, %345 : vector<8x32xf32>
    %351 = arith.addf %349, %350 : vector<8x32xf32>
    %352 = math.tanh %351 : vector<8x32xf32>
    %353 = arith.mulf %348, %352 : vector<8x32xf32>
    %354 = arith.index_cast %333 : i32 to index
    %c0_99 = arith.constant 0 : index
    %355 = vector.load %arg10[%354, %c0_99] : memref<64x32xf32, #tpu.memory_space<vmem>>, vector<8x32xf32>
    tpu.vector_store %arg10[%354, %c0_99], %353 {strides = array<i32>} : memref<64x32xf32, #tpu.memory_space<vmem>>, vector<8x32xf32>,
    %c6_i32_100 = arith.constant 6 : i32
    %c8_i32_101 = arith.constant 8 : i32
    %356 = arith.muli %c6_i32_100, %c8_i32_101 : i32
    %357 = tpu.assume_multiple %356, 8 : i32
    %358 = arith.index_cast %357 : i32 to index
    %c0_102 = arith.constant 0 : index
    %359 = vector.load %arg11[%358, %c0_102] : memref<64x128xf32, #tpu.memory_space<vmem>>, vector<8x128xf32>
    %cst_103 = arith.constant dense<0.000000e+00> : vector<8x128xf32>
    %360 = tpu.matmul %353, %209, %cst_103 {dimension_numbers = #tpu.dot_dimension_numbers<[1], [0], [0], [1], [0, 0, 1, 1], [], []>} : vector<8x32xf32>, vector<32x128xf32>, vector<8x128xf32> -> vector<8x128xf32>
    %361 = arith.addf %359, %360 : vector<8x128xf32>
    %362 = vector.extract_strided_slice %361 {offsets = [0, 0], sizes = [8, 96], strides = [1, 1]} : vector<8x128xf32> to vector<8x96xf32>
    %363 = arith.negf %362 : vector<8x96xf32>
    %364 = math.exp %363 : vector<8x96xf32>
    %cst_104 = arith.constant 1.000000e+00 : f32
    %365 = vector.broadcast %cst_104 : f32 to vector<8x96xf32>
    %366 = arith.addf %365, %364 : vector<8x96xf32>
    %367 = arith.divf %365, %366 : vector<8x96xf32>
    %368 = vector.extract_strided_slice %361 {offsets = [0, 96], sizes = [8, 32], strides = [1, 1]} : vector<8x128xf32> to vector<8x32xf32>
    %369 = math.tanh %368 : vector<8x32xf32>
    %370 = vector.extract_strided_slice %367 {offsets = [0, 0], sizes = [8, 32], strides = [1, 1]} : vector<8x96xf32> to vector<8x32xf32>
    %371 = vector.extract_strided_slice %367 {offsets = [0, 32], sizes = [8, 32], strides = [1, 1]} : vector<8x96xf32> to vector<8x32xf32>
    %372 = vector.extract_strided_slice %367 {offsets = [0, 64], sizes = [8, 32], strides = [1, 1]} : vector<8x96xf32> to vector<8x32xf32>
    %373 = arith.mulf %371, %351 : vector<8x32xf32>
    %374 = arith.mulf %370, %369 : vector<8x32xf32>
    %375 = arith.addf %373, %374 : vector<8x32xf32>
    %376 = math.tanh %375 : vector<8x32xf32>
    %377 = arith.mulf %372, %376 : vector<8x32xf32>
    %378 = arith.index_cast %357 : i32 to index
    %c0_105 = arith.constant 0 : index
    %379 = vector.load %arg10[%378, %c0_105] : memref<64x32xf32, #tpu.memory_space<vmem>>, vector<8x32xf32>
    tpu.vector_store %arg10[%378, %c0_105], %377 {strides = array<i32>} : memref<64x32xf32, #tpu.memory_space<vmem>>, vector<8x32xf32>,
    %c7_i32_106 = arith.constant 7 : i32
    %c8_i32_107 = arith.constant 8 : i32
    %380 = arith.muli %c7_i32_106, %c8_i32_107 : i32
    %381 = tpu.assume_multiple %380, 8 : i32
    %382 = arith.index_cast %381 : i32 to index
    %c0_108 = arith.constant 0 : index
    %383 = vector.load %arg11[%382, %c0_108] : memref<64x128xf32, #tpu.memory_space<vmem>>, vector<8x128xf32>
    %cst_109 = arith.constant dense<0.000000e+00> : vector<8x128xf32>
    %384 = tpu.matmul %377, %209, %cst_109 {dimension_numbers = #tpu.dot_dimension_numbers<[1], [0], [0], [1], [0, 0, 1, 1], [], []>} : vector<8x32xf32>, vector<32x128xf32>, vector<8x128xf32> -> vector<8x128xf32>
    %385 = arith.addf %383, %384 : vector<8x128xf32>
    %386 = vector.extract_strided_slice %385 {offsets = [0, 0], sizes = [8, 96], strides = [1, 1]} : vector<8x128xf32> to vector<8x96xf32>
    %387 = arith.negf %386 : vector<8x96xf32>
    %388 = math.exp %387 : vector<8x96xf32>
    %cst_110 = arith.constant 1.000000e+00 : f32
    %389 = vector.broadcast %cst_110 : f32 to vector<8x96xf32>
    %390 = arith.addf %389, %388 : vector<8x96xf32>
    %391 = arith.divf %389, %390 : vector<8x96xf32>
    %392 = vector.extract_strided_slice %385 {offsets = [0, 96], sizes = [8, 32], strides = [1, 1]} : vector<8x128xf32> to vector<8x32xf32>
    %393 = math.tanh %392 : vector<8x32xf32>
    %394 = vector.extract_strided_slice %391 {offsets = [0, 0], sizes = [8, 32], strides = [1, 1]} : vector<8x96xf32> to vector<8x32xf32>
    %395 = vector.extract_strided_slice %391 {offsets = [0, 32], sizes = [8, 32], strides = [1, 1]} : vector<8x96xf32> to vector<8x32xf32>
    %396 = vector.extract_strided_slice %391 {offsets = [0, 64], sizes = [8, 32], strides = [1, 1]} : vector<8x96xf32> to vector<8x32xf32>
    %397 = arith.mulf %395, %375 : vector<8x32xf32>
    %398 = arith.mulf %394, %393 : vector<8x32xf32>
    %399 = arith.addf %397, %398 : vector<8x32xf32>
    %400 = math.tanh %399 : vector<8x32xf32>
    %401 = arith.mulf %396, %400 : vector<8x32xf32>
    %402 = arith.index_cast %381 : i32 to index
    %c0_111 = arith.constant 0 : index
    %403 = vector.load %arg10[%402, %c0_111] : memref<64x32xf32, #tpu.memory_space<vmem>>, vector<8x32xf32>
    tpu.vector_store %arg10[%402, %c0_111], %401 {strides = array<i32>} : memref<64x32xf32, #tpu.memory_space<vmem>>, vector<8x32xf32>,
    %c8_i32_112 = arith.constant 8 : i32
    %c0_113 = arith.constant 0 : index
    %c0_114 = arith.constant 0 : index
    %404 = vector.load %arg7[%c0_113, %c0_114] : memref<32x1xf32, #tpu.memory_space<vmem>>, vector<32x1xf32>
    %c0_115 = arith.constant 0 : index
    %c0_116 = arith.constant 0 : index
    %405 = vector.load %arg8[%c0_115, %c0_116] : memref<1x1xf32, #tpu.memory_space<vmem>>, vector<1x1xf32>
    %c0_117 = arith.constant 0 : index
    %c0_118 = arith.constant 0 : index
    %406 = vector.load %arg10[%c0_117, %c0_118] : memref<64x32xf32, #tpu.memory_space<vmem>>, vector<64x32xf32>
    %cst_119 = arith.constant dense<0.000000e+00> : vector<64x1xf32>
    %407 = tpu.matmul %406, %404, %cst_119 {dimension_numbers = #tpu.dot_dimension_numbers<[1], [0], [0], [1], [0, 0, 1, 1], [], []>} : vector<64x32xf32>, vector<32x1xf32>, vector<64x1xf32> -> vector<64x1xf32>
    %408 = vector.broadcast %405 : vector<1x1xf32> to vector<64x1xf32>
    %409 = arith.addf %407, %408 : vector<64x1xf32>
    %c0_120 = arith.constant 0 : index
    %c0_121 = arith.constant 0 : index
    %410 = vector.load %arg9[%c0_120, %c0_121] : memref<64x1xf32, #tpu.memory_space<vmem>>, vector<64x1xf32>
    tpu.vector_store %arg9[%c0_120, %c0_121], %409 {strides = array<i32>} : memref<64x1xf32, #tpu.memory_space<vmem>>, vector<64x1xf32>,
    return
  }
}

</mosaic_0001>

<llo_original>
// kernel: tpu_custom_call.1
$region0: #{tpu_custom_call.1}
  #allocation0 [shape = 'u32[]', space=smem, size = 0x4, offset = 0x4, fixed_abs, tag = 'smem constant byte address 0x4 - core index']
  #allocation1 [shape = 'u32[144,128]{1,0:T(1,128)}', space=vmem, size = 0x12000, scoped, tag = 'internal scratch']
  #allocation2 [shape = 'f32[64,32]{1,0:T(8,128)}', space=vmem, size = 0x8000, scoped, tag = 'scratch operand']
  #allocation3 [shape = 'f32[64,128]{1,0:T(8,128)}', space=vmem, size = 0x8000, scoped, tag = 'scratch operand']
  #allocation4 [shape = 'f32[1,1]{1,0:T(1,128)S(1)}', space=vmem, size = 0x200, scoped, tag = 'scoped memory for tpu_custom_call.1']
  %s0 = inlined_call_operand.vmem [shape: f32[64,16], index: 0, kind: input, shape index: {}]
  %s1 = inlined_call_operand.hbm [shape: f32[16,128], index: 1, kind: input, shape index: {}]
  %s2 = inlined_call_operand.vmem [shape: f32[32,128], index: 2, kind: input, shape index: {}]
  %s3 = inlined_call_operand.vmem [shape: f32[1,128], index: 3, kind: input, shape index: {}]
  %s4 = inlined_call_operand.vmem [shape: f32[32,128], index: 4, kind: input, shape index: {}]
  %s5 = inlined_call_operand.vmem [shape: f32[32,128], index: 5, kind: input, shape index: {}]
  %s6 = inlined_call_operand.vmem [shape: f32[1,128], index: 6, kind: input, shape index: {}]
  %s7 = inlined_call_operand.vmem [shape: f32[32,1], index: 7, kind: input, shape index: {}]
  %s8 = inlined_call_operand.<no memory space> [shape: f32[1,1], index: 8, kind: input, shape index: {}]
  %s9 = inlined_call_operand.vmem [shape: f32[64,1], index: 9, kind: output, shape index: {}]
  %s10 = sld [smem:[#allocation0]]
  $region50: #{tpu_custom_call.1} parent=0
    _
  %s12 = ssub.s32 1, %s10
  %s13 = scalar_select 0, %s12, %s10
  %v14 = vstv %s8
  %15 = vst [vmem:[#allocation4] sm:$0x1] %v14
  $region1: #{tpu_custom_call.1} parent=0
    #allocation5 [shape = 'u8[8192]{0}', space=vmem, size = 0x2000, scoped, tag = 'input window, operand 1, single buffered']
    #allocation6 [shape = 's32[1]{0}', space=sflag, size = 0x4, scoped, tag = 'scoped memory for tpu_custom_call.1']
    %16 = vsyncpa [#allocation6], 0
    // Predicated region
    $region2: #{tpu_custom_call.1} parent=1 // pred_check
      _
    $region3: #{tpu_custom_call.1} parent=1 // pred_check_branch
      %18 = sbr.rel (0) target = $region5
    $region4: #{tpu_custom_call.1} parent=1 // pred_region
      _
    $region5: #{tpu_custom_call.1} parent=1 // pred_fallthru
      _
    // Predicated region
    $region6: #{tpu_custom_call.1} parent=1 // pred_check
      _
    $region7: #{tpu_custom_call.1} parent=1 // pred_check_branch
      %20 = sbr.rel (0) target = $region9
    $region8: #{tpu_custom_call.1} parent=1 // pred_region
      %s22 = ssub.s32 256, 256
      %23 = vsyncadd [#allocation6], %s22
      %s24 = sshll.u32 [#allocation5], 4
      %s25 = int_to_ptr.vmem [resolvable:$true] %s24
      %30 = dma.hbm_to_vmem [thread:$0]  %s1, 256, %s25, [#allocation6], 128, 128, 8
    $region9: #{tpu_custom_call.1} parent=1 // pred_fallthru
      _
    // Predicated region
    $region10: #{tpu_custom_call.1} parent=1 // pred_check
      _
    $region11: #{tpu_custom_call.1} parent=1 // pred_check_branch
      %32 = sbr.rel (0) target = $region13
    $region12: #{tpu_custom_call.1} parent=1 // pred_region
      _
    $region13: #{tpu_custom_call.1} parent=1 // pred_fallthru
      _
    // Predicated region
    $region14: #{tpu_custom_call.1} parent=1 // pred_check
      _
    $region15: #{tpu_custom_call.1} parent=1 // pred_check_branch
      %34 = sbr.rel (0) target = $region17
    $region16: #{tpu_custom_call.1} parent=1 // pred_region
      _
    $region17: #{tpu_custom_call.1} parent=1 // pred_fallthru
      _
    // Predicated region
    $region18: #{tpu_custom_call.1} parent=1 // pred_check
      _
    $region19: #{tpu_custom_call.1} parent=1 // pred_check_branch
      %36 = sbr.rel (0) target = $region21
    $region20: #{tpu_custom_call.1} parent=1 // pred_region
      _
    $region21: #{tpu_custom_call.1} parent=1 // pred_fallthru
      _
    // Predicated region
    $region22: #{tpu_custom_call.1} parent=1 // pred_check
      _
    $region23: #{tpu_custom_call.1} parent=1 // pred_check_branch
      %38 = sbr.rel (0) target = $region25
    $region24: #{tpu_custom_call.1} parent=1 // pred_region
      _
    $region25: #{tpu_custom_call.1} parent=1 // pred_fallthru
      _
    // Predicated region
    $region26: #{tpu_custom_call.1} parent=1 // pred_check
      _
    $region27: #{tpu_custom_call.1} parent=1 // pred_check_branch
      %40 = sbr.rel (0) target = $region29
    $region28: #{tpu_custom_call.1} parent=1 // pred_region
      _
    $region29: #{tpu_custom_call.1} parent=1 // pred_fallthru
      _
    // Predicated region
    $region30: #{tpu_custom_call.1} parent=1 // pred_check
      _
    $region31: #{tpu_custom_call.1} parent=1 // pred_check_branch
      %42 = sbr.rel (0) target = $region33
    $region32: #{tpu_custom_call.1} parent=1 // pred_region
      _
    $region33: #{tpu_custom_call.1} parent=1 // pred_fallthru
      _
    // Predicated region
    $region34: #{tpu_custom_call.1} parent=1 // pred_check
      _
    $region35: #{tpu_custom_call.1} parent=1 // pred_check_branch
      %44 = sbr.rel (0) target = $region37
    $region36: #{tpu_custom_call.1} parent=1 // pred_region
      _
    $region37: #{tpu_custom_call.1} parent=1 // pred_fallthru
      _
    // Predicated region
    $region38: #{tpu_custom_call.1} parent=1 // pred_check
      _
    $region39: #{tpu_custom_call.1} parent=1 // pred_check_branch
      %46 = sbr.rel (0) target = $region41
    $region40: #{tpu_custom_call.1} parent=1 // pred_region
      %47 = dma.done [#allocation6], 256
    $region41: #{tpu_custom_call.1} parent=1 // pred_fallthru
      _
    %v48 = vld [vmem:[%s0] sm:$0xff]
    %v49 = vld [vmem:[%s0 + $0x8] sm:$0xff]
    %v50 = vld [vmem:[%s0 + $0x10] sm:$0xff]
    %v51 = vld [vmem:[%s0 + $0x18] sm:$0xff]
    %v52 = vld [vmem:[%s0 + $0x20] sm:$0xff]
    %v53 = vld [vmem:[%s0 + $0x28] sm:$0xff]
    %v54 = vld [vmem:[%s0 + $0x30] sm:$0xff]
    %v55 = vld [vmem:[%s0 + $0x38] sm:$0xff]
    %v56 = vld [vmem:[#allocation5] sm:$0xff]
    %v57 = vld [vmem:[#allocation5 + $0x8] sm:$0xff]
    %v58 = vld [vmem:[%s3] sm:$0x1]
    %v60 = vlaneseq
    %v61 = vshrl.u32 %v60, 7
    %v62 = vsub.s32 0, %v61
    %v63 = vrot.slane %v58, %v62
    %vm65 = vcmask 130048
    %v67 = vsel %vm65, %v48, 0
    %v70 = vsel %vm65, %v49, 0
    %v73 = vsel %vm65, %v50, 0
    %v76 = vsel %vm65, %v51, 0
    %v79 = vsel %vm65, %v52, 0
    %v82 = vsel %vm65, %v53, 0
    %v85 = vsel %vm65, %v54, 0
    %v88 = vsel %vm65, %v55, 0
    %90 = vmatprep.subr.mxu0 0.0
    %91 = vmatpush1.msra.mxu0 %v56
    %92 = vmatprep.subr.mxu0 0.0
    %93 = vmatpush1.msra.mxu0 %v57
    %94 = vmatprep.subr.mxu0 0.0
    %95 = vmatpush1.msra.mxu0 0.0
    %96 = vmatprep.subr.mxu0 0.0
    %97 = vmatpush1.msra.mxu0 0.0
    %98 = vmatprep.subr.mxu0 0.0
    %99 = vmatpush1.msra.mxu0 0.0
    %100 = vmatprep.subr.mxu0 0.0
    %101 = vmatpush1.msra.mxu0 0.0
    %102 = vmatprep.subr.mxu0 0.0
    %103 = vmatpush1.msra.mxu0 0.0
    %104 = vmatprep.subr.mxu0 0.0
    %105 = vmatpush1.msra.mxu0 0.0
    %106 = vmatprep.subr.mxu0 0.0
    %107 = vmatpush1.msra.mxu0 0.0
    %108 = vmatprep.subr.mxu0 0.0
    %109 = vmatpush1.msra.mxu0 0.0
    %110 = vmatprep.subr.mxu0 0.0
    %111 = vmatpush1.msra.mxu0 0.0
    %112 = vmatprep.subr.mxu0 0.0
    %113 = vmatpush1.msra.mxu0 0.0
    %114 = vmatprep.subr.mxu0 0.0
    %115 = vmatpush1.msra.mxu0 0.0
    %116 = vmatprep.subr.mxu0 0.0
    %117 = vmatpush1.msra.mxu0 0.0
    %118 = vmatprep.subr.mxu0 0.0
    %119 = vmatpush1.msra.mxu0 0.0
    %120 = vmatprep.subr.mxu0 0.0
    %121 = vmatpush1.msra.mxu0 0.0
    %122 = vmatprep.subr.mxu0 0.0
    %123 = vmatpush1.msra.mxu0 0.0
    %124 = vmatprep.subr.mxu0 0.0
    %125 = vmatpush1.msra.mxu0 0.0
    %126 = vmatprep.subr.mxu0 0.0
    %127 = vmatpush1.msra.mxu0 0.0
    %128 = vmatprep.subr.mxu0 0.0
    %129 = vmatpush1.msra.mxu0 0.0
    %130 = vmatprep.subr.mxu0 0.0
    %131 = vmatpush1.msra.mxu0 0.0
    %132 = vmatprep.subr.mxu0 0.0
    %133 = vmatpush1.msra.mxu0 0.0
    %134 = vmatprep.subr.mxu0 0.0
    %135 = vmatpush1.msra.mxu0 0.0
    %136 = vmatprep.subr.mxu0 0.0
    %137 = vmatpush1.msra.mxu0 0.0
    %138 = vmatprep.subr.mxu0 0.0
    %139 = vmatpush1.msra.mxu0 0.0
    %140 = vmatprep.subr.mxu0 0.0
    %141 = vmatpush1.msra.mxu0 0.0
    %142 = vmatprep.subr.mxu0 0.0
    %143 = vmatpush1.msra.mxu0 0.0
    %144 = vmatprep.subr.mxu0 0.0
    %145 = vmatpush1.msra.mxu0 0.0
    %146 = vmatprep.subr.mxu0 0.0
    %147 = vmatpush1.msra.mxu0 0.0
    %148 = vmatprep.subr.mxu0 0.0
    %149 = vmatpush1.msra.mxu0 0.0
    %150 = vmatprep.subr.mxu0 0.0
    %151 = vmatpush1.msra.mxu0 0.0
    %152 = vmatprep.subr.mxu0 0.0
    %153 = vmatpush1.msra.mxu0 0.0
    %154 = vmatprep.mubr.f32.mxu0 0.0
    %155 = vmatmul.mubr.f32.gmra.mrb[0].mxu0 %v67
    %v156 = vpop.f32.mrb[0].mxu0
    %v157 = vadd.f32 %v63, %v156
    %v158 = vpop.f32.mrb[0].mxu0
    %159 = vmatprep.mubr.f32.mxu0 0.0
    %160 = vmatmul.mubr.f32.gmra.mrb[0].mxu0 %v70
    %v161 = vpop.f32.mrb[0].mxu0
    %v162 = vadd.f32 %v63, %v161
    %v163 = vpop.f32.mrb[0].mxu0
    %164 = vmatprep.mubr.f32.mxu0 0.0
    %165 = vmatmul.mubr.f32.gmra.mrb[0].mxu0 %v73
    %v166 = vpop.f32.mrb[0].mxu0
    %v167 = vadd.f32 %v63, %v166
    %v168 = vpop.f32.mrb[0].mxu0
    %169 = vmatprep.mubr.f32.mxu0 0.0
    %170 = vmatmul.mubr.f32.gmra.mrb[0].mxu0 %v76
    %v171 = vpop.f32.mrb[0].mxu0
    %v172 = vadd.f32 %v63, %v171
    %v173 = vpop.f32.mrb[0].mxu0
    %174 = vmatprep.mubr.f32.mxu0 0.0
    %175 = vmatmul.mubr.f32.gmra.mrb[0].mxu0 %v79
    %v176 = vpop.f32.mrb[0].mxu0
    %v177 = vadd.f32 %v63, %v176
    %v178 = vpop.f32.mrb[0].mxu0
    %179 = vmatprep.mubr.f32.mxu0 0.0
    %180 = vmatmul.mubr.f32.gmra.mrb[0].mxu0 %v82
    %v181 = vpop.f32.mrb[0].mxu0
    %v182 = vadd.f32 %v63, %v181
    %v183 = vpop.f32.mrb[0].mxu0
    %184 = vmatprep.mubr.f32.mxu0 0.0
    %185 = vmatmul.mubr.f32.gmra.mrb[0].mxu0 %v85
    %v186 = vpop.f32.mrb[0].mxu0
    %v187 = vadd.f32 %v63, %v186
    %v188 = vpop.f32.mrb[0].mxu0
    %189 = vmatprep.mubr.f32.mxu0 0.0
    %190 = vmatmul.mubr.f32.gmra.mrb[0].mxu0 %v88
    %v191 = vpop.f32.mrb[0].mxu0
    %v192 = vadd.f32 %v63, %v191
    %v193 = vpop.f32.mrb[0].mxu0
    %194 = vdwg.mxu0
    %195 = vst [vmem:[#allocation3] sm:$0xff] %v157
    %196 = vst [vmem:[#allocation3 + $0x8] sm:$0xff] %v162
    %197 = vst [vmem:[#allocation3 + $0x10] sm:$0xff] %v167
    %198 = vst [vmem:[#allocation3 + $0x18] sm:$0xff] %v172
    %199 = vst [vmem:[#allocation3 + $0x20] sm:$0xff] %v177
    %200 = vst [vmem:[#allocation3 + $0x28] sm:$0xff] %v182
    %201 = vst [vmem:[#allocation3 + $0x30] sm:$0xff] %v187
    %202 = vst [vmem:[#allocation3 + $0x38] sm:$0xff] %v192
    %v203 = vld [vmem:[%s2] sm:$0xff]
    %v204 = vld [vmem:[%s2 + $0x8] sm:$0xff]
    %v205 = vld [vmem:[%s2 + $0x10] sm:$0xff]
    %v206 = vld [vmem:[%s2 + $0x18] sm:$0xff]
    %v207 = vld [vmem:[#allocation3] sm:$0xff]
    %vm208 = vcmask 261120
    %v210 = vsel %vm208, 0.0, 0
    %212 = vmatprep.subr.mxu0 0.0
    %213 = vmatpush1.msra.mxu0 %v203
    %214 = vmatprep.subr.mxu0 0.0
    %215 = vmatpush1.msra.mxu0 %v204
    %216 = vmatprep.subr.mxu0 0.0
    %217 = vmatpush1.msra.mxu0 %v205
    %218 = vmatprep.subr.mxu0 0.0
    %219 = vmatpush1.msra.mxu0 %v206
    %220 = vmatprep.subr.mxu0 0.0
    %221 = vmatpush1.msra.mxu0 0.0
    %222 = vmatprep.subr.mxu0 0.0
    %223 = vmatpush1.msra.mxu0 0.0
    %224 = vmatprep.subr.mxu0 0.0
    %225 = vmatpush1.msra.mxu0 0.0
    %226 = vmatprep.subr.mxu0 0.0
    %227 = vmatpush1.msra.mxu0 0.0
    %228 = vmatprep.subr.mxu0 0.0
    %229 = vmatpush1.msra.mxu0 0.0
    %230 = vmatprep.subr.mxu0 0.0
    %231 = vmatpush1.msra.mxu0 0.0
    %232 = vmatprep.subr.mxu0 0.0
    %233 = vmatpush1.msra.mxu0 0.0
    %234 = vmatprep.subr.mxu0 0.0
    %235 = vmatpush1.msra.mxu0 0.0
    %236 = vmatprep.subr.mxu0 0.0
    %237 = vmatpush1.msra.mxu0 0.0
    %238 = vmatprep.subr.mxu0 0.0
    %239 = vmatpush1.msra.mxu0 0.0
    %240 = vmatprep.subr.mxu0 0.0
    %241 = vmatpush1.msra.mxu0 0.0
    %242 = vmatprep.subr.mxu0 0.0
    %243 = vmatpush1.msra.mxu0 0.0
    %244 = vmatprep.subr.mxu0 0.0
    %245 = vmatpush1.msra.mxu0 0.0
    %246 = vmatprep.subr.mxu0 0.0
    %247 = vmatpush1.msra.mxu0 0.0
    %248 = vmatprep.subr.mxu0 0.0
    %249 = vmatpush1.msra.mxu0 0.0
    %250 = vmatprep.subr.mxu0 0.0
    %251 = vmatpush1.msra.mxu0 0.0
    %252 = vmatprep.subr.mxu0 0.0
    %253 = vmatpush1.msra.mxu0 0.0
    %254 = vmatprep.subr.mxu0 0.0
    %255 = vmatpush1.msra.mxu0 0.0
    %256 = vmatprep.subr.mxu0 0.0
    %257 = vmatpush1.msra.mxu0 0.0
    %258 = vmatprep.subr.mxu0 0.0
    %259 = vmatpush1.msra.mxu0 0.0
    %260 = vmatprep.subr.mxu0 0.0
    %261 = vmatpush1.msra.mxu0 0.0
    %262 = vmatprep.subr.mxu0 0.0
    %263 = vmatpush1.msra.mxu0 0.0
    %264 = vmatprep.subr.mxu0 0.0
    %265 = vmatpush1.msra.mxu0 0.0
    %266 = vmatprep.subr.mxu0 0.0
    %267 = vmatpush1.msra.mxu0 0.0
    %268 = vmatprep.subr.mxu0 0.0
    %269 = vmatpush1.msra.mxu0 0.0
    %270 = vmatprep.subr.mxu0 0.0
    %271 = vmatpush1.msra.mxu0 0.0
    %272 = vmatprep.subr.mxu0 0.0
    %273 = vmatpush1.msra.mxu0 0.0
    %274 = vmatprep.subr.mxu0 0.0
    %275 = vmatpush1.msra.mxu0 0.0
    %276 = vmatprep.mubr.f32.mxu0 0.0
    %277 = vmatmul.mubr.f32.gmra.mrb[0].mxu0 %v210
    %v278 = vpop.f32.mrb[0].mxu0
    %v279 = vadd.f32 0.0, %v278
    %v280 = vpop.f32.mrb[0].mxu0
    %281 = vdwg.mxu0
    %v282 = vadd.f32 %v207, %v279
    %v283 = vxor.u32 %v282, 2147483648
    %v284 = vmul.f32 %v283, 1.442695
    %v285 = vpow.pop %v284
    %v286 = vadd.f32 %v285, 1.0
    %v287 = vrcp.pop %v286
    %v288 = vmul.f32 1.0, %v287
    %v289 = vtanh.pop %v282
    %v290 = vmul.f32 %v288, 0.0
    %292 = vrot.lane.b32.xlu0 %v289, 32
    %v293 = vpop.permute.xlu0 %292
    %v295 = vmul.f32 %v288, %v293
    %297 = vrot.lane.b32.xlu0 %v295, 32
    %v298 = vpop.permute.xlu0 %297
    %v300 = vadd.f32 %v290, %v298
    %v301 = vtanh.pop %v300
    %303 = vrot.lane.b32.xlu0 %v301, 32
    %v304 = vpop.permute.xlu0 %303
    %v306 = vmul.f32 %v288, %v304
    %308 = vrot.lane.b32.xlu0 %v306, 64
    %v309 = vpop.permute.xlu0 %308
    %311 = vst.msk [vmem:[#allocation2] sm:$0xff] %vm208, %v309
    %s312 = scalar_lea.vmem [#allocation3], 8
    %v313 = vld [vmem:[%s312] sm:$0xff]
    %v314 = vsel %vm208, %v309, 0
    %316 = vmatprep.subr.mxu0 0.0
    %317 = vmatpush1.msra.mxu0 %v203
    %318 = vmatprep.subr.mxu0 0.0
    %319 = vmatpush1.msra.mxu0 %v204
    %320 = vmatprep.subr.mxu0 0.0
    %321 = vmatpush1.msra.mxu0 %v205
    %322 = vmatprep.subr.mxu0 0.0
    %323 = vmatpush1.msra.mxu0 %v206
    %324 = vmatprep.subr.mxu0 0.0
    %325 = vmatpush1.msra.mxu0 0.0
    %326 = vmatprep.subr.mxu0 0.0
    %327 = vmatpush1.msra.mxu0 0.0
    %328 = vmatprep.subr.mxu0 0.0
    %329 = vmatpush1.msra.mxu0 0.0
    %330 = vmatprep.subr.mxu0 0.0
    %331 = vmatpush1.msra.mxu0 0.0
    %332 = vmatprep.subr.mxu0 0.0
    %333 = vmatpush1.msra.mxu0 0.0
    %334 = vmatprep.subr.mxu0 0.0
    %335 = vmatpush1.msra.mxu0 0.0
    %336 = vmatprep.subr.mxu0 0.0
    %337 = vmatpush1.msra.mxu0 0.0
    %338 = vmatprep.subr.mxu0 0.0
    %339 = vmatpush1.msra.mxu0 0.0
    %340 = vmatprep.subr.mxu0 0.0
    %341 = vmatpush1.msra.mxu0 0.0
    %342 = vmatprep.subr.mxu0 0.0
    %343 = vmatpush1.msra.mxu0 0.0
    %344 = vmatprep.subr.mxu0 0.0
    %345 = vmatpush1.msra.mxu0 0.0
    %346 = vmatprep.subr.mxu0 0.0
    %347 = vmatpush1.msra.mxu0 0.0
    %348 = vmatprep.subr.mxu0 0.0
    %349 = vmatpush1.msra.mxu0 0.0
    %350 = vmatprep.subr.mxu0 0.0
    %351 = vmatpush1.msra.mxu0 0.0
    %352 = vmatprep.subr.mxu0 0.0
    %353 = vmatpush1.msra.mxu0 0.0
    %354 = vmatprep.subr.mxu0 0.0
    %355 = vmatpush1.msra.mxu0 0.0
    %356 = vmatprep.subr.mxu0 0.0
    %357 = vmatpush1.msra.mxu0 0.0
    %358 = vmatprep.subr.mxu0 0.0
    %359 = vmatpush1.msra.mxu0 0.0
    %360 = vmatprep.subr.mxu0 0.0
    %361 = vmatpush1.msra.mxu0 0.0
    %362 = vmatprep.subr.mxu0 0.0
    %363 = vmatpush1.msra.mxu0 0.0
    %364 = vmatprep.subr.mxu0 0.0
    %365 = vmatpush1.msra.mxu0 0.0
    %366 = vmatprep.subr.mxu0 0.0
    %367 = vmatpush1.msra.mxu0 0.0
    %368 = vmatprep.subr.mxu0 0.0
    %369 = vmatpush1.msra.mxu0 0.0
    %370 = vmatprep.subr.mxu0 0.0
    %371 = vmatpush1.msra.mxu0 0.0
    %372 = vmatprep.subr.mxu0 0.0
    %373 = vmatpush1.msra.mxu0 0.0
    %374 = vmatprep.subr.mxu0 0.0
    %375 = vmatpush1.msra.mxu0 0.0
    %376 = vmatprep.subr.mxu0 0.0
    %377 = vmatpush1.msra.mxu0 0.0
    %378 = vmatprep.subr.mxu0 0.0
    %379 = vmatpush1.msra.mxu0 0.0
    %380 = vmatprep.mubr.f32.mxu0 0.0
    %381 = vmatmul.mubr.f32.gmra.mrb[0].mxu0 %v314
    %v382 = vpop.f32.mrb[0].mxu0
    %v383 = vadd.f32 0.0, %v382
    %v384 = vpop.f32.mrb[0].mxu0
    %385 = vdwg.mxu0
    %v386 = vadd.f32 %v313, %v383
    %v387 = vxor.u32 %v386, 2147483648
    %v388 = vmul.f32 %v387, 1.442695
    %v389 = vpow.pop %v388
    %v390 = vadd.f32 %v389, 1.0
    %v391 = vrcp.pop %v390
    %v392 = vmul.f32 1.0, %v391
    %v393 = vtanh.pop %v386
    %v394 = vmul.f32 %v392, %v300
    %396 = vrot.lane.b32.xlu0 %v393, 32
    %v397 = vpop.permute.xlu0 %396
    %v399 = vmul.f32 %v392, %v397
    %401 = vrot.lane.b32.xlu0 %v399, 32
    %v402 = vpop.permute.xlu0 %401
    %v404 = vadd.f32 %v394, %v402
    %v405 = vtanh.pop %v404
    %407 = vrot.lane.b32.xlu0 %v405, 32
    %v408 = vpop.permute.xlu0 %407
    %v410 = vmul.f32 %v392, %v408
    %412 = vrot.lane.b32.xlu0 %v410, 64
    %v413 = vpop.permute.xlu0 %412
    %s415 = scalar_lea.vmem [#allocation2], 8
    %416 = vst.msk [vmem:[%s415] sm:$0xff] %vm208, %v413
    %s417 = scalar_lea.vmem [#allocation3], 16
    %v418 = vld [vmem:[%s417] sm:$0xff]
    %v419 = vsel %vm208, %v413, 0
    %421 = vmatprep.subr.mxu0 0.0
    %422 = vmatpush1.msra.mxu0 %v203
    %423 = vmatprep.subr.mxu0 0.0
    %424 = vmatpush1.msra.mxu0 %v204
    %425 = vmatprep.subr.mxu0 0.0
    %426 = vmatpush1.msra.mxu0 %v205
    %427 = vmatprep.subr.mxu0 0.0
    %428 = vmatpush1.msra.mxu0 %v206
    %429 = vmatprep.subr.mxu0 0.0
    %430 = vmatpush1.msra.mxu0 0.0
    %431 = vmatprep.subr.mxu0 0.0
    %432 = vmatpush1.msra.mxu0 0.0
    %433 = vmatprep.subr.mxu0 0.0
    %434 = vmatpush1.msra.mxu0 0.0
    %435 = vmatprep.subr.mxu0 0.0
    %436 = vmatpush1.msra.mxu0 0.0
    %437 = vmatprep.subr.mxu0 0.0
    %438 = vmatpush1.msra.mxu0 0.0
    %439 = vmatprep.subr.mxu0 0.0
    %440 = vmatpush1.msra.mxu0 0.0
    %441 = vmatprep.subr.mxu0 0.0
    %442 = vmatpush1.msra.mxu0 0.0
    %443 = vmatprep.subr.mxu0 0.0
    %444 = vmatpush1.msra.mxu0 0.0
    %445 = vmatprep.subr.mxu0 0.0
    %446 = vmatpush1.msra.mxu0 0.0
    %447 = vmatprep.subr.mxu0 0.0
    %448 = vmatpush1.msra.mxu0 0.0
    %449 = vmatprep.subr.mxu0 0.0
    %450 = vmatpush1.msra.mxu0 0.0
    %451 = vmatprep.subr.mxu0 0.0
    %452 = vmatpush1.msra.mxu0 0.0
    %453 = vmatprep.subr.mxu0 0.0
    %454 = vmatpush1.msra.mxu0 0.0
    %455 = vmatprep.subr.mxu0 0.0
    %456 = vmatpush1.msra.mxu0 0.0
    %457 = vmatprep.subr.mxu0 0.0
    %458 = vmatpush1.msra.mxu0 0.0
    %459 = vmatprep.subr.mxu0 0.0
    %460 = vmatpush1.msra.mxu0 0.0
    %461 = vmatprep.subr.mxu0 0.0
    %462 = vmatpush1.msra.mxu0 0.0
    %463 = vmatprep.subr.mxu0 0.0
    %464 = vmatpush1.msra.mxu0 0.0
    %465 = vmatprep.subr.mxu0 0.0
    %466 = vmatpush1.msra.mxu0 0.0
    %467 = vmatprep.subr.mxu0 0.0
    %468 = vmatpush1.msra.mxu0 0.0
    %469 = vmatprep.subr.mxu0 0.0
    %470 = vmatpush1.msra.mxu0 0.0
    %471 = vmatprep.subr.mxu0 0.0
    %472 = vmatpush1.msra.mxu0 0.0
    %473 = vmatprep.subr.mxu0 0.0
    %474 = vmatpush1.msra.mxu0 0.0
    %475 = vmatprep.subr.mxu0 0.0
    %476 = vmatpush1.msra.mxu0 0.0
    %477 = vmatprep.subr.mxu0 0.0
    %478 = vmatpush1.msra.mxu0 0.0
    %479 = vmatprep.subr.mxu0 0.0
    %480 = vmatpush1.msra.mxu0 0.0
    %481 = vmatprep.subr.mxu0 0.0
    %482 = vmatpush1.msra.mxu0 0.0
    %483 = vmatprep.subr.mxu0 0.0
    %484 = vmatpush1.msra.mxu0 0.0
    %485 = vmatprep.mubr.f32.mxu0 0.0
    %486 = vmatmul.mubr.f32.gmra.mrb[0].mxu0 %v419
    %v487 = vpop.f32.mrb[0].mxu0
    %v488 = vadd.f32 0.0, %v487
    %v489 = vpop.f32.mrb[0].mxu0
    %490 = vdwg.mxu0
    %v491 = vadd.f32 %v418, %v488
    %v492 = vxor.u32 %v491, 2147483648
    %v493 = vmul.f32 %v492, 1.442695
    %v494 = vpow.pop %v493
    %v495 = vadd.f32 %v494, 1.0
    %v496 = vrcp.pop %v495
    %v497 = vmul.f32 1.0, %v496
    %v498 = vtanh.pop %v491
    %v499 = vmul.f32 %v497, %v404
    %501 = vrot.lane.b32.xlu0 %v498, 32
    %v502 = vpop.permute.xlu0 %501
    %v504 = vmul.f32 %v497, %v502
    %506 = vrot.lane.b32.xlu0 %v504, 32
    %v507 = vpop.permute.xlu0 %506
    %v509 = vadd.f32 %v499, %v507
    %v510 = vtanh.pop %v509
    %512 = vrot.lane.b32.xlu0 %v510, 32
    %v513 = vpop.permute.xlu0 %512
    %v515 = vmul.f32 %v497, %v513
    %517 = vrot.lane.b32.xlu0 %v515, 64
    %v518 = vpop.permute.xlu0 %517
    %s520 = scalar_lea.vmem [#allocation2], 16
    %521 = vst.msk [vmem:[%s520] sm:$0xff] %vm208, %v518
    %s522 = scalar_lea.vmem [#allocation3], 24
    %v523 = vld [vmem:[%s522] sm:$0xff]
    %v524 = vsel %vm208, %v518, 0
    %526 = vmatprep.subr.mxu0 0.0
    %527 = vmatpush1.msra.mxu0 %v203
    %528 = vmatprep.subr.mxu0 0.0
    %529 = vmatpush1.msra.mxu0 %v204
    %530 = vmatprep.subr.mxu0 0.0
    %531 = vmatpush1.msra.mxu0 %v205
    %532 = vmatprep.subr.mxu0 0.0
    %533 = vmatpush1.msra.mxu0 %v206
    %534 = vmatprep.subr.mxu0 0.0
    %535 = vmatpush1.msra.mxu0 0.0
    %536 = vmatprep.subr.mxu0 0.0
    %537 = vmatpush1.msra.mxu0 0.0
    %538 = vmatprep.subr.mxu0 0.0
    %539 = vmatpush1.msra.mxu0 0.0
    %540 = vmatprep.subr.mxu0 0.0
    %541 = vmatpush1.msra.mxu0 0.0
    %542 = vmatprep.subr.mxu0 0.0
    %543 = vmatpush1.msra.mxu0 0.0
    %544 = vmatprep.subr.mxu0 0.0
    %545 = vmatpush1.msra.mxu0 0.0
    %546 = vmatprep.subr.mxu0 0.0
    %547 = vmatpush1.msra.mxu0 0.0
    %548 = vmatprep.subr.mxu0 0.0
    %549 = vmatpush1.msra.mxu0 0.0
    %550 = vmatprep.subr.mxu0 0.0
    %551 = vmatpush1.msra.mxu0 0.0
    %552 = vmatprep.subr.mxu0 0.0
    %553 = vmatpush1.msra.mxu0 0.0
    %554 = vmatprep.subr.mxu0 0.0
    %555 = vmatpush1.msra.mxu0 0.0
    %556 = vmatprep.subr.mxu0 0.0
    %557 = vmatpush1.msra.mxu0 0.0
    %558 = vmatprep.subr.mxu0 0.0
    %559 = vmatpush1.msra.mxu0 0.0
    %560 = vmatprep.subr.mxu0 0.0
    %561 = vmatpush1.msra.mxu0 0.0
    %562 = vmatprep.subr.mxu0 0.0
    %563 = vmatpush1.msra.mxu0 0.0
    %564 = vmatprep.subr.mxu0 0.0
    %565 = vmatpush1.msra.mxu0 0.0
    %566 = vmatprep.subr.mxu0 0.0
    %567 = vmatpush1.msra.mxu0 0.0
    %568 = vmatprep.subr.mxu0 0.0
    %569 = vmatpush1.msra.mxu0 0.0
    %570 = vmatprep.subr.mxu0 0.0
    %571 = vmatpush1.msra.mxu0 0.0
    %572 = vmatprep.subr.mxu0 0.0
    %573 = vmatpush1.msra.mxu0 0.0
    %574 = vmatprep.subr.mxu0 0.0
    %575 = vmatpush1.msra.mxu0 0.0
    %576 = vmatprep.subr.mxu0 0.0
    %577 = vmatpush1.msra.mxu0 0.0
    %578 = vmatprep.subr.mxu0 0.0
    %579 = vmatpush1.msra.mxu0 0.0
    %580 = vmatprep.subr.mxu0 0.0
    %581 = vmatpush1.msra.mxu0 0.0
    %582 = vmatprep.subr.mxu0 0.0
    %583 = vmatpush1.msra.mxu0 0.0
    %584 = vmatprep.subr.mxu0 0.0
    %585 = vmatpush1.msra.mxu0 0.0
    %586 = vmatprep.subr.mxu0 0.0
    %587 = vmatpush1.msra.mxu0 0.0
    %588 = vmatprep.subr.mxu0 0.0
    %589 = vmatpush1.msra.mxu0 0.0
    %590 = vmatprep.mubr.f32.mxu0 0.0
    %591 = vmatmul.mubr.f32.gmra.mrb[0].mxu0 %v524
    %v592 = vpop.f32.mrb[0].mxu0
    %v593 = vadd.f32 0.0, %v592
    %v594 = vpop.f32.mrb[0].mxu0
    %595 = vdwg.mxu0
    %v596 = vadd.f32 %v523, %v593
    %v597 = vxor.u32 %v596, 2147483648
    %v598 = vmul.f32 %v597, 1.442695
    %v599 = vpow.pop %v598
    %v600 = vadd.f32 %v599, 1.0
    %v601 = vrcp.pop %v600
    %v602 = vmul.f32 1.0, %v601
    %v603 = vtanh.pop %v596
    %v604 = vmul.f32 %v602, %v509
    %606 = vrot.lane.b32.xlu0 %v603, 32
    %v607 = vpop.permute.xlu0 %606
    %v609 = vmul.f32 %v602, %v607
    %611 = vrot.lane.b32.xlu0 %v609, 32
    %v612 = vpop.permute.xlu0 %611
    %v614 = vadd.f32 %v604, %v612
    %v615 = vtanh.pop %v614
    %617 = vrot.lane.b32.xlu0 %v615, 32
    %v618 = vpop.permute.xlu0 %617
    %v620 = vmul.f32 %v602, %v618
    %622 = vrot.lane.b32.xlu0 %v620, 64
    %v623 = vpop.permute.xlu0 %622
    %s625 = scalar_lea.vmem [#allocation2], 24
    %626 = vst.msk [vmem:[%s625] sm:$0xff] %vm208, %v623
    %s627 = scalar_lea.vmem [#allocation3], 32
    %v628 = vld [vmem:[%s627] sm:$0xff]
    %v629 = vsel %vm208, %v623, 0
    %631 = vmatprep.subr.mxu0 0.0
    %632 = vmatpush1.msra.mxu0 %v203
    %633 = vmatprep.subr.mxu0 0.0
    %634 = vmatpush1.msra.mxu0 %v204
    %635 = vmatprep.subr.mxu0 0.0
    %636 = vmatpush1.msra.mxu0 %v205
    %637 = vmatprep.subr.mxu0 0.0
    %638 = vmatpush1.msra.mxu0 %v206
    %639 = vmatprep.subr.mxu0 0.0
    %640 = vmatpush1.msra.mxu0 0.0
    %641 = vmatprep.subr.mxu0 0.0
    %642 = vmatpush1.msra.mxu0 0.0
    %643 = vmatprep.subr.mxu0 0.0
    %644 = vmatpush1.msra.mxu0 0.0
    %645 = vmatprep.subr.mxu0 0.0
    %646 = vmatpush1.msra.mxu0 0.0
    %647 = vmatprep.subr.mxu0 0.0
    %648 = vmatpush1.msra.mxu0 0.0
    %649 = vmatprep.subr.mxu0 0.0
    %650 = vmatpush1.msra.mxu0 0.0
    %651 = vmatprep.subr.mxu0 0.0
    %652 = vmatpush1.msra.mxu0 0.0
    %653 = vmatprep.subr.mxu0 0.0
    %654 = vmatpush1.msra.mxu0 0.0
    %655 = vmatprep.subr.mxu0 0.0
    %656 = vmatpush1.msra.mxu0 0.0
    %657 = vmatprep.subr.mxu0 0.0
    %658 = vmatpush1.msra.mxu0 0.0
    %659 = vmatprep.subr.mxu0 0.0
    %660 = vmatpush1.msra.mxu0 0.0
    %661 = vmatprep.subr.mxu0 0.0
    %662 = vmatpush1.msra.mxu0 0.0
    %663 = vmatprep.subr.mxu0 0.0
    %664 = vmatpush1.msra.mxu0 0.0
    %665 = vmatprep.subr.mxu0 0.0
    %666 = vmatpush1.msra.mxu0 0.0
    %667 = vmatprep.subr.mxu0 0.0
    %668 = vmatpush1.msra.mxu0 0.0
    %669 = vmatprep.subr.mxu0 0.0
    %670 = vmatpush1.msra.mxu0 0.0
    %671 = vmatprep.subr.mxu0 0.0
    %672 = vmatpush1.msra.mxu0 0.0
    %673 = vmatprep.subr.mxu0 0.0
    %674 = vmatpush1.msra.mxu0 0.0
    %675 = vmatprep.subr.mxu0 0.0
    %676 = vmatpush1.msra.mxu0 0.0
    %677 = vmatprep.subr.mxu0 0.0
    %678 = vmatpush1.msra.mxu0 0.0
    %679 = vmatprep.subr.mxu0 0.0
    %680 = vmatpush1.msra.mxu0 0.0
    %681 = vmatprep.subr.mxu0 0.0
    %682 = vmatpush1.msra.mxu0 0.0
    %683 = vmatprep.subr.mxu0 0.0
    %684 = vmatpush1.msra.mxu0 0.0
    %685 = vmatprep.subr.mxu0 0.0
    %686 = vmatpush1.msra.mxu0 0.0
    %687 = vmatprep.subr.mxu0 0.0
    %688 = vmatpush1.msra.mxu0 0.0
    %689 = vmatprep.subr.mxu0 0.0
    %690 = vmatpush1.msra.mxu0 0.0
    %691 = vmatprep.subr.mxu0 0.0
    %692 = vmatpush1.msra.mxu0 0.0
    %693 = vmatprep.subr.mxu0 0.0
    %694 = vmatpush1.msra.mxu0 0.0
    %695 = vmatprep.mubr.f32.mxu0 0.0
    %696 = vmatmul.mubr.f32.gmra.mrb[0].mxu0 %v629
    %v697 = vpop.f32.mrb[0].mxu0
    %v698 = vadd.f32 0.0, %v697
    %v699 = vpop.f32.mrb[0].mxu0
    %700 = vdwg.mxu0
    %v701 = vadd.f32 %v628, %v698
    %v702 = vxor.u32 %v701, 2147483648
    %v703 = vmul.f32 %v702, 1.442695
    %v704 = vpow.pop %v703
    %v705 = vadd.f32 %v704, 1.0
    %v706 = vrcp.pop %v705
    %v707 = vmul.f32 1.0, %v706
    %v708 = vtanh.pop %v701
    %v709 = vmul.f32 %v707, %v614
    %711 = vrot.lane.b32.xlu0 %v708, 32
    %v712 = vpop.permute.xlu0 %711
    %v714 = vmul.f32 %v707, %v712
    %716 = vrot.lane.b32.xlu0 %v714, 32
    %v717 = vpop.permute.xlu0 %716
    %v719 = vadd.f32 %v709, %v717
    %v720 = vtanh.pop %v719
    %722 = vrot.lane.b32.xlu0 %v720, 32
    %v723 = vpop.permute.xlu0 %722
    %v725 = vmul.f32 %v707, %v723
    %727 = vrot.lane.b32.xlu0 %v725, 64
    %v728 = vpop.permute.xlu0 %727
    %s730 = scalar_lea.vmem [#allocation2], 32
    %731 = vst.msk [vmem:[%s730] sm:$0xff] %vm208, %v728
    %s732 = scalar_lea.vmem [#allocation3], 40
    %v733 = vld [vmem:[%s732] sm:$0xff]
    %v734 = vsel %vm208, %v728, 0
    %736 = vmatprep.subr.mxu0 0.0
    %737 = vmatpush1.msra.mxu0 %v203
    %738 = vmatprep.subr.mxu0 0.0
    %739 = vmatpush1.msra.mxu0 %v204
    %740 = vmatprep.subr.mxu0 0.0
    %741 = vmatpush1.msra.mxu0 %v205
    %742 = vmatprep.subr.mxu0 0.0
    %743 = vmatpush1.msra.mxu0 %v206
    %744 = vmatprep.subr.mxu0 0.0
    %745 = vmatpush1.msra.mxu0 0.0
    %746 = vmatprep.subr.mxu0 0.0
    %747 = vmatpush1.msra.mxu0 0.0
    %748 = vmatprep.subr.mxu0 0.0
    %749 = vmatpush1.msra.mxu0 0.0
    %750 = vmatprep.subr.mxu0 0.0
    %751 = vmatpush1.msra.mxu0 0.0
    %752 = vmatprep.subr.mxu0 0.0
    %753 = vmatpush1.msra.mxu0 0.0
    %754 = vmatprep.subr.mxu0 0.0
    %755 = vmatpush1.msra.mxu0 0.0
    %756 = vmatprep.subr.mxu0 0.0
    %757 = vmatpush1.msra.mxu0 0.0
    %758 = vmatprep.subr.mxu0 0.0
    %759 = vmatpush1.msra.mxu0 0.0
    %760 = vmatprep.subr.mxu0 0.0
    %761 = vmatpush1.msra.mxu0 0.0
    %762 = vmatprep.subr.mxu0 0.0
    %763 = vmatpush1.msra.mxu0 0.0
    %764 = vmatprep.subr.mxu0 0.0
    %765 = vmatpush1.msra.mxu0 0.0
    %766 = vmatprep.subr.mxu0 0.0
    %767 = vmatpush1.msra.mxu0 0.0
    %768 = vmatprep.subr.mxu0 0.0
    %769 = vmatpush1.msra.mxu0 0.0
    %770 = vmatprep.subr.mxu0 0.0
    %771 = vmatpush1.msra.mxu0 0.0
    %772 = vmatprep.subr.mxu0 0.0
    %773 = vmatpush1.msra.mxu0 0.0
    %774 = vmatprep.subr.mxu0 0.0
    %775 = vmatpush1.msra.mxu0 0.0
    %776 = vmatprep.subr.mxu0 0.0
    %777 = vmatpush1.msra.mxu0 0.0
    %778 = vmatprep.subr.mxu0 0.0
    %779 = vmatpush1.msra.mxu0 0.0
    %780 = vmatprep.subr.mxu0 0.0
    %781 = vmatpush1.msra.mxu0 0.0
    %782 = vmatprep.subr.mxu0 0.0
    %783 = vmatpush1.msra.mxu0 0.0
    %784 = vmatprep.subr.mxu0 0.0
    %785 = vmatpush1.msra.mxu0 0.0
    %786 = vmatprep.subr.mxu0 0.0
    %787 = vmatpush1.msra.mxu0 0.0
    %788 = vmatprep.subr.mxu0 0.0
    %789 = vmatpush1.msra.mxu0 0.0
    %790 = vmatprep.subr.mxu0 0.0
    %791 = vmatpush1.msra.mxu0 0.0
    %792 = vmatprep.subr.mxu0 0.0
    %793 = vmatpush1.msra.mxu0 0.0
    %794 = vmatprep.subr.mxu0 0.0
    %795 = vmatpush1.msra.mxu0 0.0
    %796 = vmatprep.subr.mxu0 0.0
    %797 = vmatpush1.msra.mxu0 0.0
    %798 = vmatprep.subr.mxu0 0.0
    %799 = vmatpush1.msra.mxu0 0.0
    %800 = vmatprep.mubr.f32.mxu0 0.0
    %801 = vmatmul.mubr.f32.gmra.mrb[0].mxu0 %v734
    %v802 = vpop.f32.mrb[0].mxu0
    %v803 = vadd.f32 0.0, %v802
    %v804 = vpop.f32.mrb[0].mxu0
    %805 = vdwg.mxu0
    %v806 = vadd.f32 %v733, %v803
    %v807 = vxor.u32 %v806, 2147483648
    %v808 = vmul.f32 %v807, 1.442695
    %v809 = vpow.pop %v808
    %v810 = vadd.f32 %v809, 1.0
    %v811 = vrcp.pop %v810
    %v812 = vmul.f32 1.0, %v811
    %v813 = vtanh.pop %v806
    %v814 = vmul.f32 %v812, %v719
    %816 = vrot.lane.b32.xlu0 %v813, 32
    %v817 = vpop.permute.xlu0 %816
    %v819 = vmul.f32 %v812, %v817
    %821 = vrot.lane.b32.xlu0 %v819, 32
    %v822 = vpop.permute.xlu0 %821
    %v824 = vadd.f32 %v814, %v822
    %v825 = vtanh.pop %v824
    %827 = vrot.lane.b32.xlu0 %v825, 32
    %v828 = vpop.permute.xlu0 %827
    %v830 = vmul.f32 %v812, %v828
    %832 = vrot.lane.b32.xlu0 %v830, 64
    %v833 = vpop.permute.xlu0 %832
    %s835 = scalar_lea.vmem [#allocation2], 40
    %836 = vst.msk [vmem:[%s835] sm:$0xff] %vm208, %v833
    %s837 = scalar_lea.vmem [#allocation3], 48
    %v838 = vld [vmem:[%s837] sm:$0xff]
    %v839 = vsel %vm208, %v833, 0
    %841 = vmatprep.subr.mxu0 0.0
    %842 = vmatpush1.msra.mxu0 %v203
    %843 = vmatprep.subr.mxu0 0.0
    %844 = vmatpush1.msra.mxu0 %v204
    %845 = vmatprep.subr.mxu0 0.0
    %846 = vmatpush1.msra.mxu0 %v205
    %847 = vmatprep.subr.mxu0 0.0
    %848 = vmatpush1.msra.mxu0 %v206
    %849 = vmatprep.subr.mxu0 0.0
    %850 = vmatpush1.msra.mxu0 0.0
    %851 = vmatprep.subr.mxu0 0.0
    %852 = vmatpush1.msra.mxu0 0.0
    %853 = vmatprep.subr.mxu0 0.0
    %854 = vmatpush1.msra.mxu0 0.0
    %855 = vmatprep.subr.mxu0 0.0
    %856 = vmatpush1.msra.mxu0 0.0
    %857 = vmatprep.subr.mxu0 0.0
    %858 = vmatpush1.msra.mxu0 0.0
    %859 = vmatprep.subr.mxu0 0.0
    %860 = vmatpush1.msra.mxu0 0.0
    %861 = vmatprep.subr.mxu0 0.0
    %862 = vmatpush1.msra.mxu0 0.0
    %863 = vmatprep.subr.mxu0 0.0
    %864 = vmatpush1.msra.mxu0 0.0
    %865 = vmatprep.subr.mxu0 0.0
    %866 = vmatpush1.msra.mxu0 0.0
    %867 = vmatprep.subr.mxu0 0.0
    %868 = vmatpush1.msra.mxu0 0.0
    %869 = vmatprep.subr.mxu0 0.0
    %870 = vmatpush1.msra.mxu0 0.0
    %871 = vmatprep.subr.mxu0 0.0
    %872 = vmatpush1.msra.mxu0 0.0
    %873 = vmatprep.subr.mxu0 0.0
    %874 = vmatpush1.msra.mxu0 0.0
    %875 = vmatprep.subr.mxu0 0.0
    %876 = vmatpush1.msra.mxu0 0.0
    %877 = vmatprep.subr.mxu0 0.0
    %878 = vmatpush1.msra.mxu0 0.0
    %879 = vmatprep.subr.mxu0 0.0
    %880 = vmatpush1.msra.mxu0 0.0
    %881 = vmatprep.subr.mxu0 0.0
    %882 = vmatpush1.msra.mxu0 0.0
    %883 = vmatprep.subr.mxu0 0.0
    %884 = vmatpush1.msra.mxu0 0.0
    %885 = vmatprep.subr.mxu0 0.0
    %886 = vmatpush1.msra.mxu0 0.0
    %887 = vmatprep.subr.mxu0 0.0
    %888 = vmatpush1.msra.mxu0 0.0
    %889 = vmatprep.subr.mxu0 0.0
    %890 = vmatpush1.msra.mxu0 0.0
    %891 = vmatprep.subr.mxu0 0.0
    %892 = vmatpush1.msra.mxu0 0.0
    %893 = vmatprep.subr.mxu0 0.0
    %894 = vmatpush1.msra.mxu0 0.0
    %895 = vmatprep.subr.mxu0 0.0
    %896 = vmatpush1.msra.mxu0 0.0
    %897 = vmatprep.subr.mxu0 0.0
    %898 = vmatpush1.msra.mxu0 0.0
    %899 = vmatprep.subr.mxu0 0.0
    %900 = vmatpush1.msra.mxu0 0.0
    %901 = vmatprep.subr.mxu0 0.0
    %902 = vmatpush1.msra.mxu0 0.0
    %903 = vmatprep.subr.mxu0 0.0
    %904 = vmatpush1.msra.mxu0 0.0
    %905 = vmatprep.mubr.f32.mxu0 0.0
    %906 = vmatmul.mubr.f32.gmra.mrb[0].mxu0 %v839
    %v907 = vpop.f32.mrb[0].mxu0
    %v908 = vadd.f32 0.0, %v907
    %v909 = vpop.f32.mrb[0].mxu0
    %910 = vdwg.mxu0
    %v911 = vadd.f32 %v838, %v908
    %v912 = vxor.u32 %v911, 2147483648
    %v913 = vmul.f32 %v912, 1.442695
    %v914 = vpow.pop %v913
    %v915 = vadd.f32 %v914, 1.0
    %v916 = vrcp.pop %v915
    %v917 = vmul.f32 1.0, %v916
    %v918 = vtanh.pop %v911
    %v919 = vmul.f32 %v917, %v824
    %921 = vrot.lane.b32.xlu0 %v918, 32
    %v922 = vpop.permute.xlu0 %921
    %v924 = vmul.f32 %v917, %v922
    %926 = vrot.lane.b32.xlu0 %v924, 32
    %v927 = vpop.permute.xlu0 %926
    %v929 = vadd.f32 %v919, %v927
    %v930 = vtanh.pop %v929
    %932 = vrot.lane.b32.xlu0 %v930, 32
    %v933 = vpop.permute.xlu0 %932
    %v935 = vmul.f32 %v917, %v933
    %937 = vrot.lane.b32.xlu0 %v935, 64
    %v938 = vpop.permute.xlu0 %937
    %s940 = scalar_lea.vmem [#allocation2], 48
    %941 = vst.msk [vmem:[%s940] sm:$0xff] %vm208, %v938
    %s942 = scalar_lea.vmem [#allocation3], 56
    %v943 = vld [vmem:[%s942] sm:$0xff]
    %v944 = vsel %vm208, %v938, 0
    %946 = vmatprep.subr.mxu0 0.0
    %947 = vmatpush1.msra.mxu0 %v203
    %948 = vmatprep.subr.mxu0 0.0
    %949 = vmatpush1.msra.mxu0 %v204
    %950 = vmatprep.subr.mxu0 0.0
    %951 = vmatpush1.msra.mxu0 %v205
    %952 = vmatprep.subr.mxu0 0.0
    %953 = vmatpush1.msra.mxu0 %v206
    %954 = vmatprep.subr.mxu0 0.0
    %955 = vmatpush1.msra.mxu0 0.0
    %956 = vmatprep.subr.mxu0 0.0
    %957 = vmatpush1.msra.mxu0 0.0
    %958 = vmatprep.subr.mxu0 0.0
    %959 = vmatpush1.msra.mxu0 0.0
    %960 = vmatprep.subr.mxu0 0.0
    %961 = vmatpush1.msra.mxu0 0.0
    %962 = vmatprep.subr.mxu0 0.0
    %963 = vmatpush1.msra.mxu0 0.0
    %964 = vmatprep.subr.mxu0 0.0
    %965 = vmatpush1.msra.mxu0 0.0
    %966 = vmatprep.subr.mxu0 0.0
    %967 = vmatpush1.msra.mxu0 0.0
    %968 = vmatprep.subr.mxu0 0.0
    %969 = vmatpush1.msra.mxu0 0.0
    %970 = vmatprep.subr.mxu0 0.0
    %971 = vmatpush1.msra.mxu0 0.0
    %972 = vmatprep.subr.mxu0 0.0
    %973 = vmatpush1.msra.mxu0 0.0
    %974 = vmatprep.subr.mxu0 0.0
    %975 = vmatpush1.msra.mxu0 0.0
    %976 = vmatprep.subr.mxu0 0.0
    %977 = vmatpush1.msra.mxu0 0.0
    %978 = vmatprep.subr.mxu0 0.0
    %979 = vmatpush1.msra.mxu0 0.0
    %980 = vmatprep.subr.mxu0 0.0
    %981 = vmatpush1.msra.mxu0 0.0
    %982 = vmatprep.subr.mxu0 0.0
    %983 = vmatpush1.msra.mxu0 0.0
    %984 = vmatprep.subr.mxu0 0.0
    %985 = vmatpush1.msra.mxu0 0.0
    %986 = vmatprep.subr.mxu0 0.0
    %987 = vmatpush1.msra.mxu0 0.0
    %988 = vmatprep.subr.mxu0 0.0
    %989 = vmatpush1.msra.mxu0 0.0
    %990 = vmatprep.subr.mxu0 0.0
    %991 = vmatpush1.msra.mxu0 0.0
    %992 = vmatprep.subr.mxu0 0.0
    %993 = vmatpush1.msra.mxu0 0.0
    %994 = vmatprep.subr.mxu0 0.0
    %995 = vmatpush1.msra.mxu0 0.0
    %996 = vmatprep.subr.mxu0 0.0
    %997 = vmatpush1.msra.mxu0 0.0
    %998 = vmatprep.subr.mxu0 0.0
    %999 = vmatpush1.msra.mxu0 0.0
    %1000 = vmatprep.subr.mxu0 0.0
    %1001 = vmatpush1.msra.mxu0 0.0
    %1002 = vmatprep.subr.mxu0 0.0
    %1003 = vmatpush1.msra.mxu0 0.0
    %1004 = vmatprep.subr.mxu0 0.0
    %1005 = vmatpush1.msra.mxu0 0.0
    %1006 = vmatprep.subr.mxu0 0.0
    %1007 = vmatpush1.msra.mxu0 0.0
    %1008 = vmatprep.subr.mxu0 0.0
    %1009 = vmatpush1.msra.mxu0 0.0
    %1010 = vmatprep.mubr.f32.mxu0 0.0
    %1011 = vmatmul.mubr.f32.gmra.mrb[0].mxu0 %v944
    %v1012 = vpop.f32.mrb[0].mxu0
    %v1013 = vadd.f32 0.0, %v1012
    %v1014 = vpop.f32.mrb[0].mxu0
    %1015 = vdwg.mxu0
    %v1016 = vadd.f32 %v943, %v1013
    %v1017 = vxor.u32 %v1016, 2147483648
    %v1018 = vmul.f32 %v1017, 1.442695
    %v1019 = vpow.pop %v1018
    %v1020 = vadd.f32 %v1019, 1.0
    %v1021 = vrcp.pop %v1020
    %v1022 = vmul.f32 1.0, %v1021
    %v1023 = vtanh.pop %v1016
    %v1024 = vmul.f32 %v1022, %v929
    %1026 = vrot.lane.b32.xlu0 %v1023, 32
    %v1027 = vpop.permute.xlu0 %1026
    %v1029 = vmul.f32 %v1022, %v1027
    %1031 = vrot.lane.b32.xlu0 %v1029, 32
    %v1032 = vpop.permute.xlu0 %1031
    %v1034 = vadd.f32 %v1024, %v1032
    %v1035 = vtanh.pop %v1034
    %1037 = vrot.lane.b32.xlu0 %v1035, 32
    %v1038 = vpop.permute.xlu0 %1037
    %v1040 = vmul.f32 %v1022, %v1038
    %1042 = vrot.lane.b32.xlu0 %v1040, 64
    %v1043 = vpop.permute.xlu0 %1042
    %s1045 = scalar_lea.vmem [#allocation2], 56
    %1046 = vst.msk [vmem:[%s1045] sm:$0xff] %vm208, %v1043
    %v1047 = vld [vmem:[#allocation2] sm:$0xff]
    %v1048 = vld [vmem:[#allocation2 + $0x8] sm:$0xff]
    %v1049 = vld [vmem:[#allocation2 + $0x10] sm:$0xff]
    %v1050 = vld [vmem:[#allocation2 + $0x18] sm:$0xff]
    %v1051 = vld [vmem:[#allocation2 + $0x20] sm:$0xff]
    %v1052 = vld [vmem:[#allocation2 + $0x28] sm:$0xff]
    %v1053 = vld [vmem:[#allocation2 + $0x30] sm:$0xff]
    %v1054 = vld [vmem:[#allocation2 + $0x38] sm:$0xff]
    %v1055 = vld [vmem:[%s4] sm:$0xff]
    %v1056 = vld [vmem:[%s4 + $0x8] sm:$0xff]
    %v1057 = vld [vmem:[%s4 + $0x10] sm:$0xff]
    %v1058 = vld [vmem:[%s4 + $0x18] sm:$0xff]
    %v1059 = vld [vmem:[%s6] sm:$0x1]
    %v1061 = vlaneseq
    %v1062 = vshrl.u32 %v1061, 7
    %v1063 = vsub.s32 0, %v1062
    %v1064 = vrot.slane %v1059, %v1063
    %v1067 = vsel %vm208, %v1047, 0
    %v1070 = vsel %vm208, %v1048, 0
    %v1073 = vsel %vm208, %v1049, 0
    %v1076 = vsel %vm208, %v1050, 0
    %v1079 = vsel %vm208, %v1051, 0
    %v1082 = vsel %vm208, %v1052, 0
    %v1085 = vsel %vm208, %v1053, 0
    %v1088 = vsel %vm208, %v1054, 0
    %1090 = vmatprep.subr.mxu0 0.0
    %1091 = vmatpush1.msra.mxu0 %v1055
    %1092 = vmatprep.subr.mxu0 0.0
    %1093 = vmatpush1.msra.mxu0 %v1056
    %1094 = vmatprep.subr.mxu0 0.0
    %1095 = vmatpush1.msra.mxu0 %v1057
    %1096 = vmatprep.subr.mxu0 0.0
    %1097 = vmatpush1.msra.mxu0 %v1058
    %1098 = vmatprep.subr.mxu0 0.0
    %1099 = vmatpush1.msra.mxu0 0.0
    %1100 = vmatprep.subr.mxu0 0.0
    %1101 = vmatpush1.msra.mxu0 0.0
    %1102 = vmatprep.subr.mxu0 0.0
    %1103 = vmatpush1.msra.mxu0 0.0
    %1104 = vmatprep.subr.mxu0 0.0
    %1105 = vmatpush1.msra.mxu0 0.0
    %1106 = vmatprep.subr.mxu0 0.0
    %1107 = vmatpush1.msra.mxu0 0.0
    %1108 = vmatprep.subr.mxu0 0.0
    %1109 = vmatpush1.msra.mxu0 0.0
    %1110 = vmatprep.subr.mxu0 0.0
    %1111 = vmatpush1.msra.mxu0 0.0
    %1112 = vmatprep.subr.mxu0 0.0
    %1113 = vmatpush1.msra.mxu0 0.0
    %1114 = vmatprep.subr.mxu0 0.0
    %1115 = vmatpush1.msra.mxu0 0.0
    %1116 = vmatprep.subr.mxu0 0.0
    %1117 = vmatpush1.msra.mxu0 0.0
    %1118 = vmatprep.subr.mxu0 0.0
    %1119 = vmatpush1.msra.mxu0 0.0
    %1120 = vmatprep.subr.mxu0 0.0
    %1121 = vmatpush1.msra.mxu0 0.0
    %1122 = vmatprep.subr.mxu0 0.0
    %1123 = vmatpush1.msra.mxu0 0.0
    %1124 = vmatprep.subr.mxu0 0.0
    %1125 = vmatpush1.msra.mxu0 0.0
    %1126 = vmatprep.subr.mxu0 0.0
    %1127 = vmatpush1.msra.mxu0 0.0
    %1128 = vmatprep.subr.mxu0 0.0
    %1129 = vmatpush1.msra.mxu0 0.0
    %1130 = vmatprep.subr.mxu0 0.0
    %1131 = vmatpush1.msra.mxu0 0.0
    %1132 = vmatprep.subr.mxu0 0.0
    %1133 = vmatpush1.msra.mxu0 0.0
    %1134 = vmatprep.subr.mxu0 0.0
    %1135 = vmatpush1.msra.mxu0 0.0
    %1136 = vmatprep.subr.mxu0 0.0
    %1137 = vmatpush1.msra.mxu0 0.0
    %1138 = vmatprep.subr.mxu0 0.0
    %1139 = vmatpush1.msra.mxu0 0.0
    %1140 = vmatprep.subr.mxu0 0.0
    %1141 = vmatpush1.msra.mxu0 0.0
    %1142 = vmatprep.subr.mxu0 0.0
    %1143 = vmatpush1.msra.mxu0 0.0
    %1144 = vmatprep.subr.mxu0 0.0
    %1145 = vmatpush1.msra.mxu0 0.0
    %1146 = vmatprep.subr.mxu0 0.0
    %1147 = vmatpush1.msra.mxu0 0.0
    %1148 = vmatprep.subr.mxu0 0.0
    %1149 = vmatpush1.msra.mxu0 0.0
    %1150 = vmatprep.subr.mxu0 0.0
    %1151 = vmatpush1.msra.mxu0 0.0
    %1152 = vmatprep.subr.mxu0 0.0
    %1153 = vmatpush1.msra.mxu0 0.0
    %1154 = vmatprep.mubr.f32.mxu0 0.0
    %1155 = vmatmul.mubr.f32.gmra.mrb[0].mxu0 %v1067
    %v1156 = vpop.f32.mrb[0].mxu0
    %v1157 = vadd.f32 %v1064, %v1156
    %v1158 = vpop.f32.mrb[0].mxu0
    %1159 = vmatprep.mubr.f32.mxu0 0.0
    %1160 = vmatmul.mubr.f32.gmra.mrb[0].mxu0 %v1070
    %v1161 = vpop.f32.mrb[0].mxu0
    %v1162 = vadd.f32 %v1064, %v1161
    %v1163 = vpop.f32.mrb[0].mxu0
    %1164 = vmatprep.mubr.f32.mxu0 0.0
    %1165 = vmatmul.mubr.f32.gmra.mrb[0].mxu0 %v1073
    %v1166 = vpop.f32.mrb[0].mxu0
    %v1167 = vadd.f32 %v1064, %v1166
    %v1168 = vpop.f32.mrb[0].mxu0
    %1169 = vmatprep.mubr.f32.mxu0 0.0
    %1170 = vmatmul.mubr.f32.gmra.mrb[0].mxu0 %v1076
    %v1171 = vpop.f32.mrb[0].mxu0
    %v1172 = vadd.f32 %v1064, %v1171
    %v1173 = vpop.f32.mrb[0].mxu0
    %1174 = vmatprep.mubr.f32.mxu0 0.0
    %1175 = vmatmul.mubr.f32.gmra.mrb[0].mxu0 %v1079
    %v1176 = vpop.f32.mrb[0].mxu0
    %v1177 = vadd.f32 %v1064, %v1176
    %v1178 = vpop.f32.mrb[0].mxu0
    %1179 = vmatprep.mubr.f32.mxu0 0.0
    %1180 = vmatmul.mubr.f32.gmra.mrb[0].mxu0 %v1082
    %v1181 = vpop.f32.mrb[0].mxu0
    %v1182 = vadd.f32 %v1064, %v1181
    %v1183 = vpop.f32.mrb[0].mxu0
    %1184 = vmatprep.mubr.f32.mxu0 0.0
    %1185 = vmatmul.mubr.f32.gmra.mrb[0].mxu0 %v1085
    %v1186 = vpop.f32.mrb[0].mxu0
    %v1187 = vadd.f32 %v1064, %v1186
    %v1188 = vpop.f32.mrb[0].mxu0
    %1189 = vmatprep.mubr.f32.mxu0 0.0
    %1190 = vmatmul.mubr.f32.gmra.mrb[0].mxu0 %v1088
    %v1191 = vpop.f32.mrb[0].mxu0
    %v1192 = vadd.f32 %v1064, %v1191
    %v1193 = vpop.f32.mrb[0].mxu0
    %1194 = vdwg.mxu0
    %1195 = vst [vmem:[#allocation3] sm:$0xff] %v1157
    %1196 = vst [vmem:[#allocation3 + $0x8] sm:$0xff] %v1162
    %1197 = vst [vmem:[#allocation3 + $0x10] sm:$0xff] %v1167
    %1198 = vst [vmem:[#allocation3 + $0x18] sm:$0xff] %v1172
    %1199 = vst [vmem:[#allocation3 + $0x20] sm:$0xff] %v1177
    %1200 = vst [vmem:[#allocation3 + $0x28] sm:$0xff] %v1182
    %1201 = vst [vmem:[#allocation3 + $0x30] sm:$0xff] %v1187
    %1202 = vst [vmem:[#allocation3 + $0x38] sm:$0xff] %v1192
    %v1203 = vld [vmem:[%s5] sm:$0xff]
    %v1204 = vld [vmem:[%s5 + $0x8] sm:$0xff]
    %v1205 = vld [vmem:[%s5 + $0x10] sm:$0xff]
    %v1206 = vld [vmem:[%s5 + $0x18] sm:$0xff]
    %v1207 = vld [vmem:[#allocation3] sm:$0xff]
    %1208 = vmatprep.subr.mxu0 0.0
    %1209 = vmatpush1.msra.mxu0 %v1203
    %1210 = vmatprep.subr.mxu0 0.0
    %1211 = vmatpush1.msra.mxu0 %v1204
    %1212 = vmatprep.subr.mxu0 0.0
    %1213 = vmatpush1.msra.mxu0 %v1205
    %1214 = vmatprep.subr.mxu0 0.0
    %1215 = vmatpush1.msra.mxu0 %v1206
    %1216 = vmatprep.subr.mxu0 0.0
    %1217 = vmatpush1.msra.mxu0 0.0
    %1218 = vmatprep.subr.mxu0 0.0
    %1219 = vmatpush1.msra.mxu0 0.0
    %1220 = vmatprep.subr.mxu0 0.0
    %1221 = vmatpush1.msra.mxu0 0.0
    %1222 = vmatprep.subr.mxu0 0.0
    %1223 = vmatpush1.msra.mxu0 0.0
    %1224 = vmatprep.subr.mxu0 0.0
    %1225 = vmatpush1.msra.mxu0 0.0
    %1226 = vmatprep.subr.mxu0 0.0
    %1227 = vmatpush1.msra.mxu0 0.0
    %1228 = vmatprep.subr.mxu0 0.0
    %1229 = vmatpush1.msra.mxu0 0.0
    %1230 = vmatprep.subr.mxu0 0.0
    %1231 = vmatpush1.msra.mxu0 0.0
    %1232 = vmatprep.subr.mxu0 0.0
    %1233 = vmatpush1.msra.mxu0 0.0
    %1234 = vmatprep.subr.mxu0 0.0
    %1235 = vmatpush1.msra.mxu0 0.0
    %1236 = vmatprep.subr.mxu0 0.0
    %1237 = vmatpush1.msra.mxu0 0.0
    %1238 = vmatprep.subr.mxu0 0.0
    %1239 = vmatpush1.msra.mxu0 0.0
    %1240 = vmatprep.subr.mxu0 0.0
    %1241 = vmatpush1.msra.mxu0 0.0
    %1242 = vmatprep.subr.mxu0 0.0
    %1243 = vmatpush1.msra.mxu0 0.0
    %1244 = vmatprep.subr.mxu0 0.0
    %1245 = vmatpush1.msra.mxu0 0.0
    %1246 = vmatprep.subr.mxu0 0.0
    %1247 = vmatpush1.msra.mxu0 0.0
    %1248 = vmatprep.subr.mxu0 0.0
    %1249 = vmatpush1.msra.mxu0 0.0
    %1250 = vmatprep.subr.mxu0 0.0
    %1251 = vmatpush1.msra.mxu0 0.0
    %1252 = vmatprep.subr.mxu0 0.0
    %1253 = vmatpush1.msra.mxu0 0.0
    %1254 = vmatprep.subr.mxu0 0.0
    %1255 = vmatpush1.msra.mxu0 0.0
    %1256 = vmatprep.subr.mxu0 0.0
    %1257 = vmatpush1.msra.mxu0 0.0
    %1258 = vmatprep.subr.mxu0 0.0
    %1259 = vmatpush1.msra.mxu0 0.0
    %1260 = vmatprep.subr.mxu0 0.0
    %1261 = vmatpush1.msra.mxu0 0.0
    %1262 = vmatprep.subr.mxu0 0.0
    %1263 = vmatpush1.msra.mxu0 0.0
    %1264 = vmatprep.subr.mxu0 0.0
    %1265 = vmatpush1.msra.mxu0 0.0
    %1266 = vmatprep.subr.mxu0 0.0
    %1267 = vmatpush1.msra.mxu0 0.0
    %1268 = vmatprep.subr.mxu0 0.0
    %1269 = vmatpush1.msra.mxu0 0.0
    %1270 = vmatprep.subr.mxu0 0.0
    %1271 = vmatpush1.msra.mxu0 0.0
    %1272 = vmatprep.mubr.f32.mxu0 0.0
    %1273 = vmatmul.mubr.f32.gmra.mrb[0].mxu0 %v210
    %v1274 = vpop.f32.mrb[0].mxu0
    %v1275 = vadd.f32 0.0, %v1274
    %v1276 = vpop.f32.mrb[0].mxu0
    %1277 = vdwg.mxu0
    %v1278 = vadd.f32 %v1207, %v1275
    %v1279 = vxor.u32 %v1278, 2147483648
    %v1280 = vmul.f32 %v1279, 1.442695
    %v1281 = vpow.pop %v1280
    %v1282 = vadd.f32 %v1281, 1.0
    %v1283 = vrcp.pop %v1282
    %v1284 = vmul.f32 1.0, %v1283
    %v1285 = vtanh.pop %v1278
    %v1286 = vmul.f32 %v1284, 0.0
    %1288 = vrot.lane.b32.xlu0 %v1285, 32
    %v1289 = vpop.permute.xlu0 %1288
    %v1291 = vmul.f32 %v1284, %v1289
    %1293 = vrot.lane.b32.xlu0 %v1291, 32
    %v1294 = vpop.permute.xlu0 %1293
    %v1296 = vadd.f32 %v1286, %v1294
    %v1297 = vtanh.pop %v1296
    %1299 = vrot.lane.b32.xlu0 %v1297, 32
    %v1300 = vpop.permute.xlu0 %1299
    %v1302 = vmul.f32 %v1284, %v1300
    %1304 = vrot.lane.b32.xlu0 %v1302, 64
    %v1305 = vpop.permute.xlu0 %1304
    %1307 = vst.msk [vmem:[#allocation2] sm:$0xff] %vm208, %v1305
    %v1308 = vld [vmem:[%s312] sm:$0xff]
    %v1309 = vsel %vm208, %v1305, 0
    %1311 = vmatprep.subr.mxu0 0.0
    %1312 = vmatpush1.msra.mxu0 %v1203
    %1313 = vmatprep.subr.mxu0 0.0
    %1314 = vmatpush1.msra.mxu0 %v1204
    %1315 = vmatprep.subr.mxu0 0.0
    %1316 = vmatpush1.msra.mxu0 %v1205
    %1317 = vmatprep.subr.mxu0 0.0
    %1318 = vmatpush1.msra.mxu0 %v1206
    %1319 = vmatprep.subr.mxu0 0.0
    %1320 = vmatpush1.msra.mxu0 0.0
    %1321 = vmatprep.subr.mxu0 0.0
    %1322 = vmatpush1.msra.mxu0 0.0
    %1323 = vmatprep.subr.mxu0 0.0
    %1324 = vmatpush1.msra.mxu0 0.0
    %1325 = vmatprep.subr.mxu0 0.0
    %1326 = vmatpush1.msra.mxu0 0.0
    %1327 = vmatprep.subr.mxu0 0.0
    %1328 = vmatpush1.msra.mxu0 0.0
    %1329 = vmatprep.subr.mxu0 0.0
    %1330 = vmatpush1.msra.mxu0 0.0
    %1331 = vmatprep.subr.mxu0 0.0
    %1332 = vmatpush1.msra.mxu0 0.0
    %1333 = vmatprep.subr.mxu0 0.0
    %1334 = vmatpush1.msra.mxu0 0.0
    %1335 = vmatprep.subr.mxu0 0.0
    %1336 = vmatpush1.msra.mxu0 0.0
    %1337 = vmatprep.subr.mxu0 0.0
    %1338 = vmatpush1.msra.mxu0 0.0
    %1339 = vmatprep.subr.mxu0 0.0
    %1340 = vmatpush1.msra.mxu0 0.0
    %1341 = vmatprep.subr.mxu0 0.0
    %1342 = vmatpush1.msra.mxu0 0.0
    %1343 = vmatprep.subr.mxu0 0.0
    %1344 = vmatpush1.msra.mxu0 0.0
    %1345 = vmatprep.subr.mxu0 0.0
    %1346 = vmatpush1.msra.mxu0 0.0
    %1347 = vmatprep.subr.mxu0 0.0
    %1348 = vmatpush1.msra.mxu0 0.0
    %1349 = vmatprep.subr.mxu0 0.0
    %1350 = vmatpush1.msra.mxu0 0.0
    %1351 = vmatprep.subr.mxu0 0.0
    %1352 = vmatpush1.msra.mxu0 0.0
    %1353 = vmatprep.subr.mxu0 0.0
    %1354 = vmatpush1.msra.mxu0 0.0
    %1355 = vmatprep.subr.mxu0 0.0
    %1356 = vmatpush1.msra.mxu0 0.0
    %1357 = vmatprep.subr.mxu0 0.0
    %1358 = vmatpush1.msra.mxu0 0.0
    %1359 = vmatprep.subr.mxu0 0.0
    %1360 = vmatpush1.msra.mxu0 0.0
    %1361 = vmatprep.subr.mxu0 0.0
    %1362 = vmatpush1.msra.mxu0 0.0
    %1363 = vmatprep.subr.mxu0 0.0
    %1364 = vmatpush1.msra.mxu0 0.0
    %1365 = vmatprep.subr.mxu0 0.0
    %1366 = vmatpush1.msra.mxu0 0.0
    %1367 = vmatprep.subr.mxu0 0.0
    %1368 = vmatpush1.msra.mxu0 0.0
    %1369 = vmatprep.subr.mxu0 0.0
    %1370 = vmatpush1.msra.mxu0 0.0
    %1371 = vmatprep.subr.mxu0 0.0
    %1372 = vmatpush1.msra.mxu0 0.0
    %1373 = vmatprep.subr.mxu0 0.0
    %1374 = vmatpush1.msra.mxu0 0.0
    %1375 = vmatprep.mubr.f32.mxu0 0.0
    %1376 = vmatmul.mubr.f32.gmra.mrb[0].mxu0 %v1309
    %v1377 = vpop.f32.mrb[0].mxu0
    %v1378 = vadd.f32 0.0, %v1377
    %v1379 = vpop.f32.mrb[0].mxu0
    %1380 = vdwg.mxu0
    %v1381 = vadd.f32 %v1308, %v1378
    %v1382 = vxor.u32 %v1381, 2147483648
    %v1383 = vmul.f32 %v1382, 1.442695
    %v1384 = vpow.pop %v1383
    %v1385 = vadd.f32 %v1384, 1.0
    %v1386 = vrcp.pop %v1385
    %v1387 = vmul.f32 1.0, %v1386
    %v1388 = vtanh.pop %v1381
    %v1389 = vmul.f32 %v1387, %v1296
    %1391 = vrot.lane.b32.xlu0 %v1388, 32
    %v1392 = vpop.permute.xlu0 %1391
    %v1394 = vmul.f32 %v1387, %v1392
    %1396 = vrot.lane.b32.xlu0 %v1394, 32
    %v1397 = vpop.permute.xlu0 %1396
    %v1399 = vadd.f32 %v1389, %v1397
    %v1400 = vtanh.pop %v1399
    %1402 = vrot.lane.b32.xlu0 %v1400, 32
    %v1403 = vpop.permute.xlu0 %1402
    %v1405 = vmul.f32 %v1387, %v1403
    %1407 = vrot.lane.b32.xlu0 %v1405, 64
    %v1408 = vpop.permute.xlu0 %1407
    %1410 = vst.msk [vmem:[%s415] sm:$0xff] %vm208, %v1408
    %v1411 = vld [vmem:[%s417] sm:$0xff]
    %v1412 = vsel %vm208, %v1408, 0
    %1414 = vmatprep.subr.mxu0 0.0
    %1415 = vmatpush1.msra.mxu0 %v1203
    %1416 = vmatprep.subr.mxu0 0.0
    %1417 = vmatpush1.msra.mxu0 %v1204
    %1418 = vmatprep.subr.mxu0 0.0
    %1419 = vmatpush1.msra.mxu0 %v1205
    %1420 = vmatprep.subr.mxu0 0.0
    %1421 = vmatpush1.msra.mxu0 %v1206
    %1422 = vmatprep.subr.mxu0 0.0
    %1423 = vmatpush1.msra.mxu0 0.0
    %1424 = vmatprep.subr.mxu0 0.0
    %1425 = vmatpush1.msra.mxu0 0.0
    %1426 = vmatprep.subr.mxu0 0.0
    %1427 = vmatpush1.msra.mxu0 0.0
    %1428 = vmatprep.subr.mxu0 0.0
    %1429 = vmatpush1.msra.mxu0 0.0
    %1430 = vmatprep.subr.mxu0 0.0
    %1431 = vmatpush1.msra.mxu0 0.0
    %1432 = vmatprep.subr.mxu0 0.0
    %1433 = vmatpush1.msra.mxu0 0.0
    %1434 = vmatprep.subr.mxu0 0.0
    %1435 = vmatpush1.msra.mxu0 0.0
    %1436 = vmatprep.subr.mxu0 0.0
    %1437 = vmatpush1.msra.mxu0 0.0
    %1438 = vmatprep.subr.mxu0 0.0
    %1439 = vmatpush1.msra.mxu0 0.0
    %1440 = vmatprep.subr.mxu0 0.0
    %1441 = vmatpush1.msra.mxu0 0.0
    %1442 = vmatprep.subr.mxu0 0.0
    %1443 = vmatpush1.msra.mxu0 0.0
    %1444 = vmatprep.subr.mxu0 0.0
    %1445 = vmatpush1.msra.mxu0 0.0
    %1446 = vmatprep.subr.mxu0 0.0
    %1447 = vmatpush1.msra.mxu0 0.0
    %1448 = vmatprep.subr.mxu0 0.0
    %1449 = vmatpush1.msra.mxu0 0.0
    %1450 = vmatprep.subr.mxu0 0.0
    %1451 = vmatpush1.msra.mxu0 0.0
    %1452 = vmatprep.subr.mxu0 0.0
    %1453 = vmatpush1.msra.mxu0 0.0
    %1454 = vmatprep.subr.mxu0 0.0
    %1455 = vmatpush1.msra.mxu0 0.0
    %1456 = vmatprep.subr.mxu0 0.0
    %1457 = vmatpush1.msra.mxu0 0.0
    %1458 = vmatprep.subr.mxu0 0.0
    %1459 = vmatpush1.msra.mxu0 0.0
    %1460 = vmatprep.subr.mxu0 0.0
    %1461 = vmatpush1.msra.mxu0 0.0
    %1462 = vmatprep.subr.mxu0 0.0
    %1463 = vmatpush1.msra.mxu0 0.0
    %1464 = vmatprep.subr.mxu0 0.0
    %1465 = vmatpush1.msra.mxu0 0.0
    %1466 = vmatprep.subr.mxu0 0.0
    %1467 = vmatpush1.msra.mxu0 0.0
    %1468 = vmatprep.subr.mxu0 0.0
    %1469 = vmatpush1.msra.mxu0 0.0
    %1470 = vmatprep.subr.mxu0 0.0
    %1471 = vmatpush1.msra.mxu0 0.0
    %1472 = vmatprep.subr.mxu0 0.0
    %1473 = vmatpush1.msra.mxu0 0.0
    %1474 = vmatprep.subr.mxu0 0.0
    %1475 = vmatpush1.msra.mxu0 0.0
    %1476 = vmatprep.subr.mxu0 0.0
    %1477 = vmatpush1.msra.mxu0 0.0
    %1478 = vmatprep.mubr.f32.mxu0 0.0
    %1479 = vmatmul.mubr.f32.gmra.mrb[0].mxu0 %v1412
    %v1480 = vpop.f32.mrb[0].mxu0
    %v1481 = vadd.f32 0.0, %v1480
    %v1482 = vpop.f32.mrb[0].mxu0
    %1483 = vdwg.mxu0
    %v1484 = vadd.f32 %v1411, %v1481
    %v1485 = vxor.u32 %v1484, 2147483648
    %v1486 = vmul.f32 %v1485, 1.442695
    %v1487 = vpow.pop %v1486
    %v1488 = vadd.f32 %v1487, 1.0
    %v1489 = vrcp.pop %v1488
    %v1490 = vmul.f32 1.0, %v1489
    %v1491 = vtanh.pop %v1484
    %v1492 = vmul.f32 %v1490, %v1399
    %1494 = vrot.lane.b32.xlu0 %v1491, 32
    %v1495 = vpop.permute.xlu0 %1494
    %v1497 = vmul.f32 %v1490, %v1495
    %1499 = vrot.lane.b32.xlu0 %v1497, 32
    %v1500 = vpop.permute.xlu0 %1499
    %v1502 = vadd.f32 %v1492, %v1500
    %v1503 = vtanh.pop %v1502
    %1505 = vrot.lane.b32.xlu0 %v1503, 32
    %v1506 = vpop.permute.xlu0 %1505
    %v1508 = vmul.f32 %v1490, %v1506
    %1510 = vrot.lane.b32.xlu0 %v1508, 64
    %v1511 = vpop.permute.xlu0 %1510
    %1513 = vst.msk [vmem:[%s520] sm:$0xff] %vm208, %v1511
    %v1514 = vld [vmem:[%s522] sm:$0xff]
    %v1515 = vsel %vm208, %v1511, 0
    %1517 = vmatprep.subr.mxu0 0.0
    %1518 = vmatpush1.msra.mxu0 %v1203
    %1519 = vmatprep.subr.mxu0 0.0
    %1520 = vmatpush1.msra.mxu0 %v1204
    %1521 = vmatprep.subr.mxu0 0.0
    %1522 = vmatpush1.msra.mxu0 %v1205
    %1523 = vmatprep.subr.mxu0 0.0
    %1524 = vmatpush1.msra.mxu0 %v1206
    %1525 = vmatprep.subr.mxu0 0.0
    %1526 = vmatpush1.msra.mxu0 0.0
    %1527 = vmatprep.subr.mxu0 0.0
    %1528 = vmatpush1.msra.mxu0 0.0
    %1529 = vmatprep.subr.mxu0 0.0
    %1530 = vmatpush1.msra.mxu0 0.0
    %1531 = vmatprep.subr.mxu0 0.0
    %1532 = vmatpush1.msra.mxu0 0.0
    %1533 = vmatprep.subr.mxu0 0.0
    %1534 = vmatpush1.msra.mxu0 0.0
    %1535 = vmatprep.subr.mxu0 0.0
    %1536 = vmatpush1.msra.mxu0 0.0
    %1537 = vmatprep.subr.mxu0 0.0
    %1538 = vmatpush1.msra.mxu0 0.0
    %1539 = vmatprep.subr.mxu0 0.0
    %1540 = vmatpush1.msra.mxu0 0.0
    %1541 = vmatprep.subr.mxu0 0.0
    %1542 = vmatpush1.msra.mxu0 0.0
    %1543 = vmatprep.subr.mxu0 0.0
    %1544 = vmatpush1.msra.mxu0 0.0
    %1545 = vmatprep.subr.mxu0 0.0
    %1546 = vmatpush1.msra.mxu0 0.0
    %1547 = vmatprep.subr.mxu0 0.0
    %1548 = vmatpush1.msra.mxu0 0.0
    %1549 = vmatprep.subr.mxu0 0.0
    %1550 = vmatpush1.msra.mxu0 0.0
    %1551 = vmatprep.subr.mxu0 0.0
    %1552 = vmatpush1.msra.mxu0 0.0
    %1553 = vmatprep.subr.mxu0 0.0
    %1554 = vmatpush1.msra.mxu0 0.0
    %1555 = vmatprep.subr.mxu0 0.0
    %1556 = vmatpush1.msra.mxu0 0.0
    %1557 = vmatprep.subr.mxu0 0.0
    %1558 = vmatpush1.msra.mxu0 0.0
    %1559 = vmatprep.subr.mxu0 0.0
    %1560 = vmatpush1.msra.mxu0 0.0
    %1561 = vmatprep.subr.mxu0 0.0
    %1562 = vmatpush1.msra.mxu0 0.0
    %1563 = vmatprep.subr.mxu0 0.0
    %1564 = vmatpush1.msra.mxu0 0.0
    %1565 = vmatprep.subr.mxu0 0.0
    %1566 = vmatpush1.msra.mxu0 0.0
    %1567 = vmatprep.subr.mxu0 0.0
    %1568 = vmatpush1.msra.mxu0 0.0
    %1569 = vmatprep.subr.mxu0 0.0
    %1570 = vmatpush1.msra.mxu0 0.0
    %1571 = vmatprep.subr.mxu0 0.0
    %1572 = vmatpush1.msra.mxu0 0.0
    %1573 = vmatprep.subr.mxu0 0.0
    %1574 = vmatpush1.msra.mxu0 0.0
    %1575 = vmatprep.subr.mxu0 0.0
    %1576 = vmatpush1.msra.mxu0 0.0
    %1577 = vmatprep.subr.mxu0 0.0
    %1578 = vmatpush1.msra.mxu0 0.0
    %1579 = vmatprep.subr.mxu0 0.0
    %1580 = vmatpush1.msra.mxu0 0.0
    %1581 = vmatprep.mubr.f32.mxu0 0.0
    %1582 = vmatmul.mubr.f32.gmra.mrb[0].mxu0 %v1515
    %v1583 = vpop.f32.mrb[0].mxu0
    %v1584 = vadd.f32 0.0, %v1583
    %v1585 = vpop.f32.mrb[0].mxu0
    %1586 = vdwg.mxu0
    %v1587 = vadd.f32 %v1514, %v1584
    %v1588 = vxor.u32 %v1587, 2147483648
    %v1589 = vmul.f32 %v1588, 1.442695
    %v1590 = vpow.pop %v1589
    %v1591 = vadd.f32 %v1590, 1.0
    %v1592 = vrcp.pop %v1591
    %v1593 = vmul.f32 1.0, %v1592
    %v1594 = vtanh.pop %v1587
    %v1595 = vmul.f32 %v1593, %v1502
    %1597 = vrot.lane.b32.xlu0 %v1594, 32
    %v1598 = vpop.permute.xlu0 %1597
    %v1600 = vmul.f32 %v1593, %v1598
    %1602 = vrot.lane.b32.xlu0 %v1600, 32
    %v1603 = vpop.permute.xlu0 %1602
    %v1605 = vadd.f32 %v1595, %v1603
    %v1606 = vtanh.pop %v1605
    %1608 = vrot.lane.b32.xlu0 %v1606, 32
    %v1609 = vpop.permute.xlu0 %1608
    %v1611 = vmul.f32 %v1593, %v1609
    %1613 = vrot.lane.b32.xlu0 %v1611, 64
    %v1614 = vpop.permute.xlu0 %1613
    %1616 = vst.msk [vmem:[%s625] sm:$0xff] %vm208, %v1614
    %v1617 = vld [vmem:[%s627] sm:$0xff]
    %v1618 = vsel %vm208, %v1614, 0
    %1620 = vmatprep.subr.mxu0 0.0
    %1621 = vmatpush1.msra.mxu0 %v1203
    %1622 = vmatprep.subr.mxu0 0.0
    %1623 = vmatpush1.msra.mxu0 %v1204
    %1624 = vmatprep.subr.mxu0 0.0
    %1625 = vmatpush1.msra.mxu0 %v1205
    %1626 = vmatprep.subr.mxu0 0.0
    %1627 = vmatpush1.msra.mxu0 %v1206
    %1628 = vmatprep.subr.mxu0 0.0
    %1629 = vmatpush1.msra.mxu0 0.0
    %1630 = vmatprep.subr.mxu0 0.0
    %1631 = vmatpush1.msra.mxu0 0.0
    %1632 = vmatprep.subr.mxu0 0.0
    %1633 = vmatpush1.msra.mxu0 0.0
    %1634 = vmatprep.subr.mxu0 0.0
    %1635 = vmatpush1.msra.mxu0 0.0
    %1636 = vmatprep.subr.mxu0 0.0
    %1637 = vmatpush1.msra.mxu0 0.0
    %1638 = vmatprep.subr.mxu0 0.0
    %1639 = vmatpush1.msra.mxu0 0.0
    %1640 = vmatprep.subr.mxu0 0.0
    %1641 = vmatpush1.msra.mxu0 0.0
    %1642 = vmatprep.subr.mxu0 0.0
    %1643 = vmatpush1.msra.mxu0 0.0
    %1644 = vmatprep.subr.mxu0 0.0
    %1645 = vmatpush1.msra.mxu0 0.0
    %1646 = vmatprep.subr.mxu0 0.0
    %1647 = vmatpush1.msra.mxu0 0.0
    %1648 = vmatprep.subr.mxu0 0.0
    %1649 = vmatpush1.msra.mxu0 0.0
    %1650 = vmatprep.subr.mxu0 0.0
    %1651 = vmatpush1.msra.mxu0 0.0
    %1652 = vmatprep.subr.mxu0 0.0
    %1653 = vmatpush1.msra.mxu0 0.0
    %1654 = vmatprep.subr.mxu0 0.0
    %1655 = vmatpush1.msra.mxu0 0.0
    %1656 = vmatprep.subr.mxu0 0.0
    %1657 = vmatpush1.msra.mxu0 0.0
    %1658 = vmatprep.subr.mxu0 0.0
    %1659 = vmatpush1.msra.mxu0 0.0
    %1660 = vmatprep.subr.mxu0 0.0
    %1661 = vmatpush1.msra.mxu0 0.0
    %1662 = vmatprep.subr.mxu0 0.0
    %1663 = vmatpush1.msra.mxu0 0.0
    %1664 = vmatprep.subr.mxu0 0.0
    %1665 = vmatpush1.msra.mxu0 0.0
    %1666 = vmatprep.subr.mxu0 0.0
    %1667 = vmatpush1.msra.mxu0 0.0
    %1668 = vmatprep.subr.mxu0 0.0
    %1669 = vmatpush1.msra.mxu0 0.0
    %1670 = vmatprep.subr.mxu0 0.0
    %1671 = vmatpush1.msra.mxu0 0.0
    %1672 = vmatprep.subr.mxu0 0.0
    %1673 = vmatpush1.msra.mxu0 0.0
    %1674 = vmatprep.subr.mxu0 0.0
    %1675 = vmatpush1.msra.mxu0 0.0
    %1676 = vmatprep.subr.mxu0 0.0
    %1677 = vmatpush1.msra.mxu0 0.0
    %1678 = vmatprep.subr.mxu0 0.0
    %1679 = vmatpush1.msra.mxu0 0.0
    %1680 = vmatprep.subr.mxu0 0.0
    %1681 = vmatpush1.msra.mxu0 0.0
    %1682 = vmatprep.subr.mxu0 0.0
    %1683 = vmatpush1.msra.mxu0 0.0
    %1684 = vmatprep.mubr.f32.mxu0 0.0
    %1685 = vmatmul.mubr.f32.gmra.mrb[0].mxu0 %v1618
    %v1686 = vpop.f32.mrb[0].mxu0
    %v1687 = vadd.f32 0.0, %v1686
    %v1688 = vpop.f32.mrb[0].mxu0
    %1689 = vdwg.mxu0
    %v1690 = vadd.f32 %v1617, %v1687
    %v1691 = vxor.u32 %v1690, 2147483648
    %v1692 = vmul.f32 %v1691, 1.442695
    %v1693 = vpow.pop %v1692
    %v1694 = vadd.f32 %v1693, 1.0
    %v1695 = vrcp.pop %v1694
    %v1696 = vmul.f32 1.0, %v1695
    %v1697 = vtanh.pop %v1690
    %v1698 = vmul.f32 %v1696, %v1605
    %1700 = vrot.lane.b32.xlu0 %v1697, 32
    %v1701 = vpop.permute.xlu0 %1700
    %v1703 = vmul.f32 %v1696, %v1701
    %1705 = vrot.lane.b32.xlu0 %v1703, 32
    %v1706 = vpop.permute.xlu0 %1705
    %v1708 = vadd.f32 %v1698, %v1706
    %v1709 = vtanh.pop %v1708
    %1711 = vrot.lane.b32.xlu0 %v1709, 32
    %v1712 = vpop.permute.xlu0 %1711
    %v1714 = vmul.f32 %v1696, %v1712
    %1716 = vrot.lane.b32.xlu0 %v1714, 64
    %v1717 = vpop.permute.xlu0 %1716
    %1719 = vst.msk [vmem:[%s730] sm:$0xff] %vm208, %v1717
    %v1720 = vld [vmem:[%s732] sm:$0xff]
    %v1721 = vsel %vm208, %v1717, 0
    %1723 = vmatprep.subr.mxu0 0.0
    %1724 = vmatpush1.msra.mxu0 %v1203
    %1725 = vmatprep.subr.mxu0 0.0
    %1726 = vmatpush1.msra.mxu0 %v1204
    %1727 = vmatprep.subr.mxu0 0.0
    %1728 = vmatpush1.msra.mxu0 %v1205
    %1729 = vmatprep.subr.mxu0 0.0
    %1730 = vmatpush1.msra.mxu0 %v1206
    %1731 = vmatprep.subr.mxu0 0.0
    %1732 = vmatpush1.msra.mxu0 0.0
    %1733 = vmatprep.subr.mxu0 0.0
    %1734 = vmatpush1.msra.mxu0 0.0
    %1735 = vmatprep.subr.mxu0 0.0
    %1736 = vmatpush1.msra.mxu0 0.0
    %1737 = vmatprep.subr.mxu0 0.0
    %1738 = vmatpush1.msra.mxu0 0.0
    %1739 = vmatprep.subr.mxu0 0.0
    %1740 = vmatpush1.msra.mxu0 0.0
    %1741 = vmatprep.subr.mxu0 0.0
    %1742 = vmatpush1.msra.mxu0 0.0
    %1743 = vmatprep.subr.mxu0 0.0
    %1744 = vmatpush1.msra.mxu0 0.0
    %1745 = vmatprep.subr.mxu0 0.0
    %1746 = vmatpush1.msra.mxu0 0.0
    %1747 = vmatprep.subr.mxu0 0.0
    %1748 = vmatpush1.msra.mxu0 0.0
    %1749 = vmatprep.subr.mxu0 0.0
    %1750 = vmatpush1.msra.mxu0 0.0
    %1751 = vmatprep.subr.mxu0 0.0
    %1752 = vmatpush1.msra.mxu0 0.0
    %1753 = vmatprep.subr.mxu0 0.0
    %1754 = vmatpush1.msra.mxu0 0.0
    %1755 = vmatprep.subr.mxu0 0.0
    %1756 = vmatpush1.msra.mxu0 0.0
    %1757 = vmatprep.subr.mxu0 0.0
    %1758 = vmatpush1.msra.mxu0 0.0
    %1759 = vmatprep.subr.mxu0 0.0
    %1760 = vmatpush1.msra.mxu0 0.0
    %1761 = vmatprep.subr.mxu0 0.0
    %1762 = vmatpush1.msra.mxu0 0.0
    %1763 = vmatprep.subr.mxu0 0.0
    %1764 = vmatpush1.msra.mxu0 0.0
    %1765 = vmatprep.subr.mxu0 0.0
    %1766 = vmatpush1.msra.mxu0 0.0
    %1767 = vmatprep.subr.mxu0 0.0
    %1768 = vmatpush1.msra.mxu0 0.0
    %1769 = vmatprep.subr.mxu0 0.0
    %1770 = vmatpush1.msra.mxu0 0.0
    %1771 = vmatprep.subr.mxu0 0.0
    %1772 = vmatpush1.msra.mxu0 0.0
    %1773 = vmatprep.subr.mxu0 0.0
    %1774 = vmatpush1.msra.mxu0 0.0
    %1775 = vmatprep.subr.mxu0 0.0
    %1776 = vmatpush1.msra.mxu0 0.0
    %1777 = vmatprep.subr.mxu0 0.0
    %1778 = vmatpush1.msra.mxu0 0.0
    %1779 = vmatprep.subr.mxu0 0.0
    %1780 = vmatpush1.msra.mxu0 0.0
    %1781 = vmatprep.subr.mxu0 0.0
    %1782 = vmatpush1.msra.mxu0 0.0
    %1783 = vmatprep.subr.mxu0 0.0
    %1784 = vmatpush1.msra.mxu0 0.0
    %1785 = vmatprep.subr.mxu0 0.0
    %1786 = vmatpush1.msra.mxu0 0.0
    %1787 = vmatprep.mubr.f32.mxu0 0.0
    %1788 = vmatmul.mubr.f32.gmra.mrb[0].mxu0 %v1721
    %v1789 = vpop.f32.mrb[0].mxu0
    %v1790 = vadd.f32 0.0, %v1789
    %v1791 = vpop.f32.mrb[0].mxu0
    %1792 = vdwg.mxu0
    %v1793 = vadd.f32 %v1720, %v1790
    %v1794 = vxor.u32 %v1793, 2147483648
    %v1795 = vmul.f32 %v1794, 1.442695
    %v1796 = vpow.pop %v1795
    %v1797 = vadd.f32 %v1796, 1.0
    %v1798 = vrcp.pop %v1797
    %v1799 = vmul.f32 1.0, %v1798
    %v1800 = vtanh.pop %v1793
    %v1801 = vmul.f32 %v1799, %v1708
    %1803 = vrot.lane.b32.xlu0 %v1800, 32
    %v1804 = vpop.permute.xlu0 %1803
    %v1806 = vmul.f32 %v1799, %v1804
    %1808 = vrot.lane.b32.xlu0 %v1806, 32
    %v1809 = vpop.permute.xlu0 %1808
    %v1811 = vadd.f32 %v1801, %v1809
    %v1812 = vtanh.pop %v1811
    %1814 = vrot.lane.b32.xlu0 %v1812, 32
    %v1815 = vpop.permute.xlu0 %1814
    %v1817 = vmul.f32 %v1799, %v1815
    %1819 = vrot.lane.b32.xlu0 %v1817, 64
    %v1820 = vpop.permute.xlu0 %1819
    %1822 = vst.msk [vmem:[%s835] sm:$0xff] %vm208, %v1820
    %v1823 = vld [vmem:[%s837] sm:$0xff]
    %v1824 = vsel %vm208, %v1820, 0
    %1826 = vmatprep.subr.mxu0 0.0
    %1827 = vmatpush1.msra.mxu0 %v1203
    %1828 = vmatprep.subr.mxu0 0.0
    %1829 = vmatpush1.msra.mxu0 %v1204
    %1830 = vmatprep.subr.mxu0 0.0
    %1831 = vmatpush1.msra.mxu0 %v1205
    %1832 = vmatprep.subr.mxu0 0.0
    %1833 = vmatpush1.msra.mxu0 %v1206
    %1834 = vmatprep.subr.mxu0 0.0
    %1835 = vmatpush1.msra.mxu0 0.0
    %1836 = vmatprep.subr.mxu0 0.0
    %1837 = vmatpush1.msra.mxu0 0.0
    %1838 = vmatprep.subr.mxu0 0.0
    %1839 = vmatpush1.msra.mxu0 0.0
    %1840 = vmatprep.subr.mxu0 0.0
    %1841 = vmatpush1.msra.mxu0 0.0
    %1842 = vmatprep.subr.mxu0 0.0
    %1843 = vmatpush1.msra.mxu0 0.0
    %1844 = vmatprep.subr.mxu0 0.0
    %1845 = vmatpush1.msra.mxu0 0.0
    %1846 = vmatprep.subr.mxu0 0.0
    %1847 = vmatpush1.msra.mxu0 0.0
    %1848 = vmatprep.subr.mxu0 0.0
    %1849 = vmatpush1.msra.mxu0 0.0
    %1850 = vmatprep.subr.mxu0 0.0
    %1851 = vmatpush1.msra.mxu0 0.0
    %1852 = vmatprep.subr.mxu0 0.0
    %1853 = vmatpush1.msra.mxu0 0.0
    %1854 = vmatprep.subr.mxu0 0.0
    %1855 = vmatpush1.msra.mxu0 0.0
    %1856 = vmatprep.subr.mxu0 0.0
    %1857 = vmatpush1.msra.mxu0 0.0
    %1858 = vmatprep.subr.mxu0 0.0
    %1859 = vmatpush1.msra.mxu0 0.0
    %1860 = vmatprep.subr.mxu0 0.0
    %1861 = vmatpush1.msra.mxu0 0.0
    %1862 = vmatprep.subr.mxu0 0.0
    %1863 = vmatpush1.msra.mxu0 0.0
    %1864 = vmatprep.subr.mxu0 0.0
    %1865 = vmatpush1.msra.mxu0 0.0
    %1866 = vmatprep.subr.mxu0 0.0
    %1867 = vmatpush1.msra.mxu0 0.0
    %1868 = vmatprep.subr.mxu0 0.0
    %1869 = vmatpush1.msra.mxu0 0.0
    %1870 = vmatprep.subr.mxu0 0.0
    %1871 = vmatpush1.msra.mxu0 0.0
    %1872 = vmatprep.subr.mxu0 0.0
    %1873 = vmatpush1.msra.mxu0 0.0
    %1874 = vmatprep.subr.mxu0 0.0
    %1875 = vmatpush1.msra.mxu0 0.0
    %1876 = vmatprep.subr.mxu0 0.0
    %1877 = vmatpush1.msra.mxu0 0.0
    %1878 = vmatprep.subr.mxu0 0.0
    %1879 = vmatpush1.msra.mxu0 0.0
    %1880 = vmatprep.subr.mxu0 0.0
    %1881 = vmatpush1.msra.mxu0 0.0
    %1882 = vmatprep.subr.mxu0 0.0
    %1883 = vmatpush1.msra.mxu0 0.0
    %1884 = vmatprep.subr.mxu0 0.0
    %1885 = vmatpush1.msra.mxu0 0.0
    %1886 = vmatprep.subr.mxu0 0.0
    %1887 = vmatpush1.msra.mxu0 0.0
    %1888 = vmatprep.subr.mxu0 0.0
    %1889 = vmatpush1.msra.mxu0 0.0
    %1890 = vmatprep.mubr.f32.mxu0 0.0
    %1891 = vmatmul.mubr.f32.gmra.mrb[0].mxu0 %v1824
    %v1892 = vpop.f32.mrb[0].mxu0
    %v1893 = vadd.f32 0.0, %v1892
    %v1894 = vpop.f32.mrb[0].mxu0
    %1895 = vdwg.mxu0
    %v1896 = vadd.f32 %v1823, %v1893
    %v1897 = vxor.u32 %v1896, 2147483648
    %v1898 = vmul.f32 %v1897, 1.442695
    %v1899 = vpow.pop %v1898
    %v1900 = vadd.f32 %v1899, 1.0
    %v1901 = vrcp.pop %v1900
    %v1902 = vmul.f32 1.0, %v1901
    %v1903 = vtanh.pop %v1896
    %v1904 = vmul.f32 %v1902, %v1811
    %1906 = vrot.lane.b32.xlu0 %v1903, 32
    %v1907 = vpop.permute.xlu0 %1906
    %v1909 = vmul.f32 %v1902, %v1907
    %1911 = vrot.lane.b32.xlu0 %v1909, 32
    %v1912 = vpop.permute.xlu0 %1911
    %v1914 = vadd.f32 %v1904, %v1912
    %v1915 = vtanh.pop %v1914
    %1917 = vrot.lane.b32.xlu0 %v1915, 32
    %v1918 = vpop.permute.xlu0 %1917
    %v1920 = vmul.f32 %v1902, %v1918
    %1922 = vrot.lane.b32.xlu0 %v1920, 64
    %v1923 = vpop.permute.xlu0 %1922
    %1925 = vst.msk [vmem:[%s940] sm:$0xff] %vm208, %v1923
    %v1926 = vld [vmem:[%s942] sm:$0xff]
    %v1927 = vsel %vm208, %v1923, 0
    %1929 = vmatprep.subr.mxu0 0.0
    %1930 = vmatpush1.msra.mxu0 %v1203
    %1931 = vmatprep.subr.mxu0 0.0
    %1932 = vmatpush1.msra.mxu0 %v1204
    %1933 = vmatprep.subr.mxu0 0.0
    %1934 = vmatpush1.msra.mxu0 %v1205
    %1935 = vmatprep.subr.mxu0 0.0
    %1936 = vmatpush1.msra.mxu0 %v1206
    %1937 = vmatprep.subr.mxu0 0.0
    %1938 = vmatpush1.msra.mxu0 0.0
    %1939 = vmatprep.subr.mxu0 0.0
    %1940 = vmatpush1.msra.mxu0 0.0
    %1941 = vmatprep.subr.mxu0 0.0
    %1942 = vmatpush1.msra.mxu0 0.0
    %1943 = vmatprep.subr.mxu0 0.0
    %1944 = vmatpush1.msra.mxu0 0.0
    %1945 = vmatprep.subr.mxu0 0.0
    %1946 = vmatpush1.msra.mxu0 0.0
    %1947 = vmatprep.subr.mxu0 0.0
    %1948 = vmatpush1.msra.mxu0 0.0
    %1949 = vmatprep.subr.mxu0 0.0
    %1950 = vmatpush1.msra.mxu0 0.0
    %1951 = vmatprep.subr.mxu0 0.0
    %1952 = vmatpush1.msra.mxu0 0.0
    %1953 = vmatprep.subr.mxu0 0.0
    %1954 = vmatpush1.msra.mxu0 0.0
    %1955 = vmatprep.subr.mxu0 0.0
    %1956 = vmatpush1.msra.mxu0 0.0
    %1957 = vmatprep.subr.mxu0 0.0
    %1958 = vmatpush1.msra.mxu0 0.0
    %1959 = vmatprep.subr.mxu0 0.0
    %1960 = vmatpush1.msra.mxu0 0.0
    %1961 = vmatprep.subr.mxu0 0.0
    %1962 = vmatpush1.msra.mxu0 0.0
    %1963 = vmatprep.subr.mxu0 0.0
    %1964 = vmatpush1.msra.mxu0 0.0
    %1965 = vmatprep.subr.mxu0 0.0
    %1966 = vmatpush1.msra.mxu0 0.0
    %1967 = vmatprep.subr.mxu0 0.0
    %1968 = vmatpush1.msra.mxu0 0.0
    %1969 = vmatprep.subr.mxu0 0.0
    %1970 = vmatpush1.msra.mxu0 0.0
    %1971 = vmatprep.subr.mxu0 0.0
    %1972 = vmatpush1.msra.mxu0 0.0
    %1973 = vmatprep.subr.mxu0 0.0
    %1974 = vmatpush1.msra.mxu0 0.0
    %1975 = vmatprep.subr.mxu0 0.0
    %1976 = vmatpush1.msra.mxu0 0.0
    %1977 = vmatprep.subr.mxu0 0.0
    %1978 = vmatpush1.msra.mxu0 0.0
    %1979 = vmatprep.subr.mxu0 0.0
    %1980 = vmatpush1.msra.mxu0 0.0
    %1981 = vmatprep.subr.mxu0 0.0
    %1982 = vmatpush1.msra.mxu0 0.0
    %1983 = vmatprep.subr.mxu0 0.0
    %1984 = vmatpush1.msra.mxu0 0.0
    %1985 = vmatprep.subr.mxu0 0.0
    %1986 = vmatpush1.msra.mxu0 0.0
    %1987 = vmatprep.subr.mxu0 0.0
    %1988 = vmatpush1.msra.mxu0 0.0
    %1989 = vmatprep.subr.mxu0 0.0
    %1990 = vmatpush1.msra.mxu0 0.0
    %1991 = vmatprep.subr.mxu0 0.0
    %1992 = vmatpush1.msra.mxu0 0.0
    %1993 = vmatprep.mubr.f32.mxu0 0.0
    %1994 = vmatmul.mubr.f32.gmra.mrb[0].mxu0 %v1927
    %v1995 = vpop.f32.mrb[0].mxu0
    %v1996 = vadd.f32 0.0, %v1995
    %v1997 = vpop.f32.mrb[0].mxu0
    %1998 = vdwg.mxu0
    %v1999 = vadd.f32 %v1926, %v1996
    %v2000 = vxor.u32 %v1999, 2147483648
    %v2001 = vmul.f32 %v2000, 1.442695
    %v2002 = vpow.pop %v2001
    %v2003 = vadd.f32 %v2002, 1.0
    %v2004 = vrcp.pop %v2003
    %v2005 = vmul.f32 1.0, %v2004
    %v2006 = vtanh.pop %v1999
    %v2007 = vmul.f32 %v2005, %v1914
    %2009 = vrot.lane.b32.xlu0 %v2006, 32
    %v2010 = vpop.permute.xlu0 %2009
    %v2012 = vmul.f32 %v2005, %v2010
    %2014 = vrot.lane.b32.xlu0 %v2012, 32
    %v2015 = vpop.permute.xlu0 %2014
    %v2017 = vadd.f32 %v2007, %v2015
    %v2018 = vtanh.pop %v2017
    %2020 = vrot.lane.b32.xlu0 %v2018, 32
    %v2021 = vpop.permute.xlu0 %2020
    %v2023 = vmul.f32 %v2005, %v2021
    %2025 = vrot.lane.b32.xlu0 %v2023, 64
    %v2026 = vpop.permute.xlu0 %2025
    %2028 = vst.msk [vmem:[%s1045] sm:$0xff] %vm208, %v2026
    %v2029 = vld [vmem:[%s7] sm:$0xff]
    %v2030 = vld [vmem:[%s7 + $0x8] sm:$0xff]
    %v2031 = vld [vmem:[%s7 + $0x10] sm:$0xff]
    %v2032 = vld [vmem:[%s7 + $0x18] sm:$0xff]
    %v2033 = vld [vmem:[#allocation4] sm:$0x1]
    %v2034 = vld [vmem:[#allocation2] sm:$0xff]
    %v2035 = vld [vmem:[#allocation2 + $0x8] sm:$0xff]
    %v2036 = vld [vmem:[#allocation2 + $0x10] sm:$0xff]
    %v2037 = vld [vmem:[#allocation2 + $0x18] sm:$0xff]
    %v2038 = vld [vmem:[#allocation2 + $0x20] sm:$0xff]
    %v2039 = vld [vmem:[#allocation2 + $0x28] sm:$0xff]
    %v2040 = vld [vmem:[#allocation2 + $0x30] sm:$0xff]
    %v2041 = vld [vmem:[#allocation2 + $0x38] sm:$0xff]
    %v2043 = vlaneseq
    %v2044 = vshrl.u32 %v2043, 7
    %v2045 = vsub.s32 0, %v2044
    %v2046 = vrot.slane %v2033, %v2045
    %v2049 = vsel %vm208, %v2034, 0
    %v2052 = vsel %vm208, %v2035, 0
    %v2055 = vsel %vm208, %v2036, 0
    %v2058 = vsel %vm208, %v2037, 0
    %v2061 = vsel %vm208, %v2038, 0
    %v2064 = vsel %vm208, %v2039, 0
    %v2067 = vsel %vm208, %v2040, 0
    %v2070 = vsel %vm208, %v2041, 0
    %2072 = vmatprep.subr.mxu0 0.0
    %2073 = vmatpush1.msra.mxu0 %v2029
    %2074 = vmatprep.subr.mxu0 0.0
    %2075 = vmatpush1.msra.mxu0 %v2030
    %2076 = vmatprep.subr.mxu0 0.0
    %2077 = vmatpush1.msra.mxu0 %v2031
    %2078 = vmatprep.subr.mxu0 0.0
    %2079 = vmatpush1.msra.mxu0 %v2032
    %2080 = vmatprep.subr.mxu0 0.0
    %2081 = vmatpush1.msra.mxu0 0.0
    %2082 = vmatprep.subr.mxu0 0.0
    %2083 = vmatpush1.msra.mxu0 0.0
    %2084 = vmatprep.subr.mxu0 0.0
    %2085 = vmatpush1.msra.mxu0 0.0
    %2086 = vmatprep.subr.mxu0 0.0
    %2087 = vmatpush1.msra.mxu0 0.0
    %2088 = vmatprep.subr.mxu0 0.0
    %2089 = vmatpush1.msra.mxu0 0.0
    %2090 = vmatprep.subr.mxu0 0.0
    %2091 = vmatpush1.msra.mxu0 0.0
    %2092 = vmatprep.subr.mxu0 0.0
    %2093 = vmatpush1.msra.mxu0 0.0
    %2094 = vmatprep.subr.mxu0 0.0
    %2095 = vmatpush1.msra.mxu0 0.0
    %2096 = vmatprep.subr.mxu0 0.0
    %2097 = vmatpush1.msra.mxu0 0.0
    %2098 = vmatprep.subr.mxu0 0.0
    %2099 = vmatpush1.msra.mxu0 0.0
    %2100 = vmatprep.subr.mxu0 0.0
    %2101 = vmatpush1.msra.mxu0 0.0
    %2102 = vmatprep.subr.mxu0 0.0
    %2103 = vmatpush1.msra.mxu0 0.0
    %2104 = vmatprep.subr.mxu0 0.0
    %2105 = vmatpush1.msra.mxu0 0.0
    %2106 = vmatprep.subr.mxu0 0.0
    %2107 = vmatpush1.msra.mxu0 0.0
    %2108 = vmatprep.subr.mxu0 0.0
    %2109 = vmatpush1.msra.mxu0 0.0
    %2110 = vmatprep.subr.mxu0 0.0
    %2111 = vmatpush1.msra.mxu0 0.0
    %2112 = vmatprep.subr.mxu0 0.0
    %2113 = vmatpush1.msra.mxu0 0.0
    %2114 = vmatprep.subr.mxu0 0.0
    %2115 = vmatpush1.msra.mxu0 0.0
    %2116 = vmatprep.subr.mxu0 0.0
    %2117 = vmatpush1.msra.mxu0 0.0
    %2118 = vmatprep.subr.mxu0 0.0
    %2119 = vmatpush1.msra.mxu0 0.0
    %2120 = vmatprep.subr.mxu0 0.0
    %2121 = vmatpush1.msra.mxu0 0.0
    %2122 = vmatprep.subr.mxu0 0.0
    %2123 = vmatpush1.msra.mxu0 0.0
    %2124 = vmatprep.subr.mxu0 0.0
    %2125 = vmatpush1.msra.mxu0 0.0
    %2126 = vmatprep.subr.mxu0 0.0
    %2127 = vmatpush1.msra.mxu0 0.0
    %2128 = vmatprep.subr.mxu0 0.0
    %2129 = vmatpush1.msra.mxu0 0.0
    %2130 = vmatprep.subr.mxu0 0.0
    %2131 = vmatpush1.msra.mxu0 0.0
    %2132 = vmatprep.subr.mxu0 0.0
    %2133 = vmatpush1.msra.mxu0 0.0
    %2134 = vmatprep.subr.mxu0 0.0
    %2135 = vmatpush1.msra.mxu0 0.0
    %2136 = vmatprep.mubr.f32.mxu0 0.0
    %2137 = vmatmul.mubr.f32.gmra.mrb[0].mxu0 %v2049
    %v2138 = vpop.f32.mrb[0].mxu0
    %v2139 = vadd.f32 %v2046, %v2138
    %v2140 = vpop.f32.mrb[0].mxu0
    %2141 = vmatprep.mubr.f32.mxu0 0.0
    %2142 = vmatmul.mubr.f32.gmra.mrb[0].mxu0 %v2052
    %v2143 = vpop.f32.mrb[0].mxu0
    %v2144 = vadd.f32 %v2046, %v2143
    %v2145 = vpop.f32.mrb[0].mxu0
    %2146 = vmatprep.mubr.f32.mxu0 0.0
    %2147 = vmatmul.mubr.f32.gmra.mrb[0].mxu0 %v2055
    %v2148 = vpop.f32.mrb[0].mxu0
    %v2149 = vadd.f32 %v2046, %v2148
    %v2150 = vpop.f32.mrb[0].mxu0
    %2151 = vmatprep.mubr.f32.mxu0 0.0
    %2152 = vmatmul.mubr.f32.gmra.mrb[0].mxu0 %v2058
    %v2153 = vpop.f32.mrb[0].mxu0
    %v2154 = vadd.f32 %v2046, %v2153
    %v2155 = vpop.f32.mrb[0].mxu0
    %2156 = vmatprep.mubr.f32.mxu0 0.0
    %2157 = vmatmul.mubr.f32.gmra.mrb[0].mxu0 %v2061
    %v2158 = vpop.f32.mrb[0].mxu0
    %v2159 = vadd.f32 %v2046, %v2158
    %v2160 = vpop.f32.mrb[0].mxu0
    %2161 = vmatprep.mubr.f32.mxu0 0.0
    %2162 = vmatmul.mubr.f32.gmra.mrb[0].mxu0 %v2064
    %v2163 = vpop.f32.mrb[0].mxu0
    %v2164 = vadd.f32 %v2046, %v2163
    %v2165 = vpop.f32.mrb[0].mxu0
    %2166 = vmatprep.mubr.f32.mxu0 0.0
    %2167 = vmatmul.mubr.f32.gmra.mrb[0].mxu0 %v2067
    %v2168 = vpop.f32.mrb[0].mxu0
    %v2169 = vadd.f32 %v2046, %v2168
    %v2170 = vpop.f32.mrb[0].mxu0
    %2171 = vmatprep.mubr.f32.mxu0 0.0
    %2172 = vmatmul.mubr.f32.gmra.mrb[0].mxu0 %v2070
    %v2173 = vpop.f32.mrb[0].mxu0
    %v2174 = vadd.f32 %v2046, %v2173
    %v2175 = vpop.f32.mrb[0].mxu0
    %2176 = vdwg.mxu0
    %vm2177 = vcmask 7168
    %2178 = vst.msk [vmem:[%s9] sm:$0xff] %vm2177, %v2139
    %2179 = vst.msk [vmem:[%s9 + $0x8] sm:$0xff] %vm2177, %v2144
    %2180 = vst.msk [vmem:[%s9 + $0x10] sm:$0xff] %vm2177, %v2149
    %2181 = vst.msk [vmem:[%s9 + $0x18] sm:$0xff] %vm2177, %v2154
    %2182 = vst.msk [vmem:[%s9 + $0x20] sm:$0xff] %vm2177, %v2159
    %2183 = vst.msk [vmem:[%s9 + $0x28] sm:$0xff] %vm2177, %v2164
    %2184 = vst.msk [vmem:[%s9 + $0x30] sm:$0xff] %vm2177, %v2169
    %2185 = vst.msk [vmem:[%s9 + $0x38] sm:$0xff] %vm2177, %v2174
    // Predicated region
    $region42: #{tpu_custom_call.1} parent=1 // pred_check
      _
    $region43: #{tpu_custom_call.1} parent=1 // pred_check_branch
      %2187 = sbr.rel (0) target = $region45
    $region44: #{tpu_custom_call.1} parent=1 // pred_region
      _
    $region45: #{tpu_custom_call.1} parent=1 // pred_fallthru
      _
    // Predicated region
    $region46: #{tpu_custom_call.1} parent=1 // pred_check
      _
    $region47: #{tpu_custom_call.1} parent=1 // pred_check_branch
      %2189 = sbr.rel (0) target = $region49
    $region48: #{tpu_custom_call.1} parent=1 // pred_region
      _
    $region49: #{tpu_custom_call.1} parent=1 // pred_fallthru
      _
    %2190 = vsyncpa [#allocation6], 1

</llo_original>
